<compile_context>
chip_gen: v5e
topology: v5e:2x2
jax: 0.10.0
libtpu: 0.0.40
codegen_flags: <defaults>
</compile_context>

<pallas_src>
import functools

import jax
import jax.numpy as jnp
from jax.experimental import pallas as pl
from jax.experimental.pallas import tpu as pltpu  # noqa: F401  (kept for parity with template)

_FC_PAD = 128   # lane-dense output width for the (..., 2) FC result
_B_PAD = 8      # batch padded to sublane width for (8,128)-aligned row blocks


# ---------------------------------------------------------------------------
# Fused Pallas kernel
# ---------------------------------------------------------------------------

def _eeg_lstm_fused_kernel(x_ref,
                           wih1_ref, whh1_ref, b1_ref,
                           wih2_ref, whh2_ref, b2_ref,
                           wfc_ref, bfc_ref,
                           h01_ref, c01_ref, h02_ref, c02_ref,
                           out_ref,
                           *, T, Bp):
    """Fused EEGLSTM forward.

    x_ref   : (T*Bp, D)    time-major flattened input, batch zero-padded to Bp
    wih*    : (D, 4H)      input->gate weights, i/f/o columns pre-scaled by 0.5
    whh*    : (H, 4H) bf16 hidden->gate weights, i/f/o columns pre-scaled by 0.5
    b*      : (1, 4H)      combined bias (b_ih + b_hh), i/f/o pre-scaled by 0.5
    wfc/bfc : (H2, 128) / (1, 128)   fc zero-padded to 128 output lanes
    h0*/c0* : (Bp, H)      initial hidden / cell state (rows >= real B are pad)
    out_ref : (T*Bp, 128)  relu(fc(h2)) in the first 2 lanes, zeros elsewhere
    """

    def run_layer(gx, whh_bf16, h, c, H):
        # gx already contains X @ W_ih + bias (hoisted out of the recurrence).
        # Because the i/f/o columns are pre-scaled by 0.5, ONE tanh over the
        # full (Bp, 4H) gate tile gives sigmoid(z) = 0.5*(tanh(z/2)+1) for
        # i/f/o and tanh(z) for g -> 2 EUP pushes per step (tanh(gates),
        # tanh(c)) instead of 3.
        hs = []
        # TODO(synk): switch to lax.fori_loop + VMEM carry for large T.
        for t in range(T):
            gates = gx[t * Bp:(t + 1) * Bp, :] + jnp.dot(
                h.astype(jnp.bfloat16), whh_bf16,
                preferred_element_type=jnp.float32)           # (Bp, 4H)
            tg = jnp.tanh(gates)                               # EUP push #1
            i_g = 0.5 * (tg[:, 0 * H:1 * H] + 1.0)             # sigmoid(i)
            f_g = 0.5 * (tg[:, 1 * H:2 * H] + 1.0)             # sigmoid(f)
            g_g = tg[:, 2 * H:3 * H]                           # tanh(g)
            o_g = 0.5 * (tg[:, 3 * H:4 * H] + 1.0)             # sigmoid(o)
            c = f_g * c + i_g * g_g
            h = o_g * jnp.tanh(c)                              # EUP push #2
            hs.append(h)
        # One sublane-aligned concat instead of T per-step scratch stores.
        return jnp.concatenate(hs, axis=0), h, c

    H1 = whh1_ref.shape[0]
    H2 = whh2_ref.shape[0]

    # ---- layer 1: hoisted input projection (one MXU matmul for all T) ----
    x = x_ref[...]
    gx1 = (jnp.dot(x, wih1_ref[...], preferred_element_type=jnp.float32)
           + b1_ref[...])                                      # (T*Bp, 4H1)
    h1_seq, _, _ = run_layer(gx1, whh1_ref[...],
                             h01_ref[...], c01_ref[...], H1)

    # nn.Dropout(p=0.2) is identity in eval / inference mode.
    # TODO(synk): training-mode dropout RNG not reproduced (no seed contract).

    # ---- layer 2: input projection hoisted over the full h1 sequence ----
    gx2 = (jnp.dot(h1_seq, wih2_ref[...], preferred_element_type=jnp.float32)
           + b2_ref[...])                                      # (T*Bp, 4H2)
    h2_seq, _, _ = run_layer(gx2, whh2_ref[...],
                             h02_ref[...], c02_ref[...], H2)

    # ---- fc + relu: single lane-dense (T*Bp, 128) store ----
    y = (jnp.dot(h2_seq, wfc_ref[...], preferred_element_type=jnp.float32)
         + bfc_ref[...])
    out_ref[...] = jnp.maximum(y, 0.0).astype(out_ref.dtype)


# ---------------------------------------------------------------------------
# One-time parameter preparation (hoisted out of the per-call hot path)
# ---------------------------------------------------------------------------

def prepare_params(params):
    """Re-layout raw PyTorch-style params for the kernel (call ONCE)."""
    def prep_lstm(p):
        H = p["w_hh"].shape[1]
        # PyTorch gate row order is [i, f, g, o]; pre-scale i/f/o by 0.5 so the
        # kernel needs only one tanh per gate tile.
        scale = jnp.concatenate([
            jnp.full((H,), 0.5, jnp.float32),
            jnp.full((H,), 0.5, jnp.float32),
            jnp.ones((H,), jnp.float32),
            jnp.full((H,), 0.5, jnp.float32)])
        w_ih_t = (p["w_ih"] * scale[:, None]).T                # (D, 4H)
        w_hh_t = (p["w_hh"] * scale[:, None]).T                # (H, 4H)
        bias = ((p["b_ih"] + p["b_hh"]) * scale)[None, :]      # (1, 4H)
        return {"w_ih_t": w_ih_t.astype(jnp.float32),
                "w_hh_t": w_hh_t.astype(jnp.bfloat16),         # recurrent dot in bf16
                "bias": bias.astype(jnp.float32)}

    H2 = params["lstm2"]["w_hh"].shape[1]
    # Zero-pad fc to 128 output lanes: the kernel's only HBM store is then
    # lane-dense; relu(0 + 0) = 0 keeps the padded lanes exact.
    wfc = jnp.zeros((H2, _FC_PAD), jnp.float32).at[:, :2].set(params["fc"]["w"].T)
    bfc = jnp.zeros((1, _FC_PAD), jnp.float32).at[:, :2].set(params["fc"]["b"][None, :])

    return {"lstm1": prep_lstm(params["lstm1"]),
            "lstm2": prep_lstm(params["lstm2"]),
            "fc": {"w_pad": wfc, "b_pad": bfc}}


# ---------------------------------------------------------------------------
# Jitted forward wrapper
# ---------------------------------------------------------------------------

@jax.jit
def eeg_lstm_forward(prepped, x_bft, hidden):
    """x_bft: (B, input_size, T) as in PyTorch; returns (B, T, 2)."""
    B, F, T = x_bft.shape
    H1 = prepped["lstm1"]["w_hh_t"].shape[0]
    H2 = prepped["lstm2"]["w_hh_t"].shape[0]
    Bp = _B_PAD
    assert B <= Bp

    # (B, F, T) -> time-major (T, B, F) -> zero-pad batch to Bp (sublane width)
    # -> flatten to (T*Bp, F).  Every per-timestep row block is then
    # (8,128)-tile aligned inside the kernel; padded rows are discarded below.
    x_tbf = jnp.transpose(x_bft, (2, 0, 1)).astype(jnp.float32)
    x_pad = jnp.pad(x_tbf, ((0, 0), (0, Bp - B), (0, 0))).reshape(T * Bp, F)

    def pad_state(s, H):
        return jnp.pad(s.reshape(B, H).astype(jnp.float32), ((0, Bp - B), (0, 0)))

    h01 = pad_state(hidden[0], H1)
    c01 = pad_state(hidden[1], H1)
    h02 = pad_state(hidden[2], H2)
    c02 = pad_state(hidden[3], H2)

    def full(shape):
        return pl.BlockSpec(shape, lambda: (0,) * len(shape))

    out_padded = pl.pallas_call(
        functools.partial(_eeg_lstm_fused_kernel, T=T, Bp=Bp),
        out_shape=jax.ShapeDtypeStruct((T * Bp, _FC_PAD), jnp.float32),
        in_specs=[
            full((T * Bp, F)),                                        # x (time-major)
            full((F, 4 * H1)), full((H1, 4 * H1)), full((1, 4 * H1)),  # lstm1
            full((H1, 4 * H2)), full((H2, 4 * H2)), full((1, 4 * H2)), # lstm2
            full((H2, _FC_PAD)), full((1, _FC_PAD)),                   # fc (padded)
            full((Bp, H1)), full((Bp, H1)), full((Bp, H2)), full((Bp, H2)),
        ],
        out_specs=full((T * Bp, _FC_PAD)),
    )(x_pad,
      prepped["lstm1"]["w_ih_t"], prepped["lstm1"]["w_hh_t"], prepped["lstm1"]["bias"],
      prepped["lstm2"]["w_ih_t"], prepped["lstm2"]["w_hh_t"], prepped["lstm2"]["bias"],
      prepped["fc"]["w_pad"], prepped["fc"]["b_pad"],
      h01, c01, h02, c02)

    # (T*Bp, 128) -> (T, Bp, 128) -> keep real batch rows & the 2 valid lanes.
    y = out_padded.reshape(T, Bp, _FC_PAD)[:, :B, :2]
    return jnp.transpose(y, (1, 0, 2))                                # (B, T, 2)


# ---------------------------------------------------------------------------
# Parameters / hidden state (PyTorch-style raw layout)
# ---------------------------------------------------------------------------

def init_params(key, input_size, hidden_size1, hidden_size2):
    """Deterministic parameter init (uniform, PyTorch-style ranges/layout)."""
    def uniform(k, shape, bound):
        return jax.random.uniform(k, shape, jnp.float32, -bound, bound)

    keys = jax.random.split(key, 10)
    ki = 0
    params = {}
    for name, (D, H) in (("lstm1", (input_size, hidden_size1)),
                         ("lstm2", (hidden_size1, hidden_size2))):
        bound = 1.0 / float(H) ** 0.5
        params[name] = {
            "w_ih": uniform(keys[ki + 0], (4 * H, D), bound),   # PyTorch (4H, D)
            "w_hh": uniform(keys[ki + 1], (4 * H, H), bound),   # PyTorch (4H, H)
            "b_ih": uniform(keys[ki + 2], (4 * H,), bound),
            "b_hh": uniform(keys[ki + 3], (4 * H,), bound),
        }
        ki += 4

    fc_bound = 1.0 / float(hidden_size2) ** 0.5
    params["fc"] = {"w": uniform(keys[ki], (2, hidden_size2), fc_bound),   # (2, H2)
                    "b": uniform(keys[ki + 1], (2,), fc_bound)}            # (2,)
    return params


def init_hidden(batch_size, hidden_size1, hidden_size2, dtype=jnp.float32):
    """Equivalent of EEGLSTM.initHidden(): [(1,B,H1),(1,B,H1),(1,B,H2),(1,B,H2)]."""
    return [jnp.zeros((1, batch_size, hidden_size1), dtype),
            jnp.zeros((1, batch_size, hidden_size1), dtype),
            jnp.zeros((1, batch_size, hidden_size2), dtype),
            jnp.zeros((1, batch_size, hidden_size2), dtype)]


# ---------------------------------------------------------------------------
# Pure-JAX f32 reference (matches PyTorch semantics) for a sanity check
# ---------------------------------------------------------------------------

def _lstm_ref(x_tbd, w_ih, w_hh, b_ih, b_hh, h0, c0):
    H = w_hh.shape[1]
    wi, wh, b = w_ih.T, w_hh.T, (b_ih + b_hh)[None, :]

    def step(carry, x_t):
        h, c = carry
        g = x_t @ wi + h @ wh + b
        i = jax.nn.sigmoid(g[:, 0 * H:1 * H])
        f = jax.nn.sigmoid(g[:, 1 * H:2 * H])
        gg = jnp.tanh(g[:, 2 * H:3 * H])
        o = jax.nn.sigmoid(g[:, 3 * H:4 * H])
        c = f * c + i * gg
        h = o * jnp.tanh(c)
        return (h, c), h

    _, hs = jax.lax.scan(step, (h0, c0), x_tbd)
    return hs


def forward_ref(params, x_bft, hidden):
    B, F, T = x_bft.shape
    H1 = params["lstm1"]["w_hh"].shape[1]
    H2 = params["lstm2"]["w_hh"].shape[1]
    x_tbd = jnp.transpose(x_bft, (2, 0, 1))
    h = _lstm_ref(x_tbd, **params["lstm1"],
                  h0=hidden[0].reshape(B, H1), c0=hidden[1].reshape(B, H1))
    h = _lstm_ref(h, **params["lstm2"],
                  h0=hidden[2].reshape(B, H2), c0=hidden[3].reshape(B, H2))
    y = jnp.maximum(h @ params["fc"]["w"].T + params["fc"]["b"][None, :], 0.0)
    return jnp.transpose(y, (1, 0, 2))


# ---------------------------------------------------------------------------

if __name__ == "__main__":
    B, T = 2, 8
    INPUT_SIZE, H1, H2 = 32, 32, 32

    key = jax.random.PRNGKey(0)
    k_param, k_x = jax.random.split(key)

    params = init_params(k_param, INPUT_SIZE, H1, H2)
    prepped = prepare_params(params)            # one-time weight re-layout
    x = jax.random.normal(k_x, (B, INPUT_SIZE, T), jnp.float32)  # PyTorch layout
    hidden = init_hidden(B, H1, H2)

    out = eeg_lstm_forward(prepped, x, hidden)
    out = jax.block_until_ready(out)

    ref = forward_ref(params, x, hidden)
    assert out.shape == (B, T, 2), out.shape
    err = float(jnp.max(jnp.abs(out - ref)))
    # bf16 recurrent matmul (per perf review) loosens parity vs the f32 reference.
    assert err < 5e-2, err

    print("KERNEL_OK")
</pallas_src>

<mosaic_0001>
module attributes {stable_mosaic.version = 11 : i64} {
  func.func @_eeg_lstm_fused_kernel(%arg0: memref<64x32xf32, #tpu.memory_space<vmem>>, %arg1: memref<32x128xf32, #tpu.memory_space<vmem>>, %arg2: memref<32x128xbf16, #tpu.memory_space<vmem>>, %arg3: memref<1x128xf32, #tpu.memory_space<vmem>>, %arg4: memref<32x128xf32, #tpu.memory_space<vmem>>, %arg5: memref<32x128xbf16, #tpu.memory_space<vmem>>, %arg6: memref<1x128xf32, #tpu.memory_space<vmem>>, %arg7: memref<32x128xf32, #tpu.memory_space<vmem>>, %arg8: memref<1x128xf32, #tpu.memory_space<vmem>>, %arg9: memref<8x32xf32, #tpu.memory_space<vmem>>, %arg10: memref<8x32xf32, #tpu.memory_space<vmem>>, %arg11: memref<8x32xf32, #tpu.memory_space<vmem>>, %arg12: memref<8x32xf32, #tpu.memory_space<vmem>>, %arg13: memref<64x128xf32, #tpu.memory_space<vmem>>) attributes {dimension_semantics = [], scalar_prefetch = 0 : i64, scratch_operands = 0 : i64, tpu.core_type = #tpu.core_type<tc>} {
    %c0 = arith.constant 0 : index
    %c0_0 = arith.constant 0 : index
    %0 = vector.load %arg0[%c0, %c0_0] : memref<64x32xf32, #tpu.memory_space<vmem>>, vector<64x32xf32>
    %c0_1 = arith.constant 0 : index
    %c0_2 = arith.constant 0 : index
    %1 = vector.load %arg1[%c0_1, %c0_2] : memref<32x128xf32, #tpu.memory_space<vmem>>, vector<32x128xf32>
    %cst = arith.constant dense<0.000000e+00> : vector<64x128xf32>
    %2 = tpu.matmul %0, %1, %cst {dimension_numbers = #tpu.dot_dimension_numbers<[1], [0], [0], [1], [0, 0, 1, 1], [], []>} : vector<64x32xf32>, vector<32x128xf32>, vector<64x128xf32> -> vector<64x128xf32>
    %c0_3 = arith.constant 0 : index
    %c0_4 = arith.constant 0 : index
    %3 = vector.load %arg3[%c0_3, %c0_4] : memref<1x128xf32, #tpu.memory_space<vmem>>, vector<1x128xf32>
    %4 = vector.broadcast %3 : vector<1x128xf32> to vector<64x128xf32>
    %5 = arith.addf %2, %4 : vector<64x128xf32>
    %c0_5 = arith.constant 0 : index
    %c0_6 = arith.constant 0 : index
    %6 = vector.load %arg2[%c0_5, %c0_6] : memref<32x128xbf16, #tpu.memory_space<vmem>>, vector<32x128xbf16>
    %c0_7 = arith.constant 0 : index
    %c0_8 = arith.constant 0 : index
    %7 = vector.load %arg9[%c0_7, %c0_8] : memref<8x32xf32, #tpu.memory_space<vmem>>, vector<8x32xf32>
    %c0_9 = arith.constant 0 : index
    %c0_10 = arith.constant 0 : index
    %8 = vector.load %arg10[%c0_9, %c0_10] : memref<8x32xf32, #tpu.memory_space<vmem>>, vector<8x32xf32>
    %9 = vector.extract_strided_slice %5 {offsets = [0, 0], sizes = [8, 128], strides = [1, 1]} : vector<64x128xf32> to vector<8x128xf32>
    %10 = arith.truncf %7 : vector<8x32xf32> to vector<8x32xbf16>
    %cst_11 = arith.constant dense<0.000000e+00> : vector<8x128xf32>
    %11 = tpu.matmul %10, %6, %cst_11 {dimension_numbers = #tpu.dot_dimension_numbers<[1], [0], [0], [1], [0, 0, 1, 1], [], []>} : vector<8x32xbf16>, vector<32x128xbf16>, vector<8x128xf32> -> vector<8x128xf32>
    %12 = arith.addf %9, %11 : vector<8x128xf32>
    %13 = math.tanh %12 : vector<8x128xf32>
    %14 = vector.extract_strided_slice %13 {offsets = [0, 0], sizes = [8, 32], strides = [1, 1]} : vector<8x128xf32> to vector<8x32xf32>
    %cst_12 = arith.constant 1.000000e+00 : f32
    %15 = vector.broadcast %cst_12 : f32 to vector<8x32xf32>
    %16 = arith.addf %14, %15 : vector<8x32xf32>
    %cst_13 = arith.constant 5.000000e-01 : f32
    %17 = vector.broadcast %cst_13 : f32 to vector<8x32xf32>
    %18 = arith.mulf %17, %16 : vector<8x32xf32>
    %19 = vector.extract_strided_slice %13 {offsets = [0, 32], sizes = [8, 32], strides = [1, 1]} : vector<8x128xf32> to vector<8x32xf32>
    %cst_14 = arith.constant 1.000000e+00 : f32
    %20 = vector.broadcast %cst_14 : f32 to vector<8x32xf32>
    %21 = arith.addf %19, %20 : vector<8x32xf32>
    %cst_15 = arith.constant 5.000000e-01 : f32
    %22 = vector.broadcast %cst_15 : f32 to vector<8x32xf32>
    %23 = arith.mulf %22, %21 : vector<8x32xf32>
    %24 = vector.extract_strided_slice %13 {offsets = [0, 64], sizes = [8, 32], strides = [1, 1]} : vector<8x128xf32> to vector<8x32xf32>
    %25 = vector.extract_strided_slice %13 {offsets = [0, 96], sizes = [8, 32], strides = [1, 1]} : vector<8x128xf32> to vector<8x32xf32>
    %cst_16 = arith.constant 1.000000e+00 : f32
    %26 = vector.broadcast %cst_16 : f32 to vector<8x32xf32>
    %27 = arith.addf %25, %26 : vector<8x32xf32>
    %cst_17 = arith.constant 5.000000e-01 : f32
    %28 = vector.broadcast %cst_17 : f32 to vector<8x32xf32>
    %29 = arith.mulf %28, %27 : vector<8x32xf32>
    %30 = arith.mulf %23, %8 : vector<8x32xf32>
    %31 = arith.mulf %18, %24 : vector<8x32xf32>
    %32 = arith.addf %30, %31 : vector<8x32xf32>
    %33 = math.tanh %32 : vector<8x32xf32>
    %34 = arith.mulf %29, %33 : vector<8x32xf32>
    %35 = vector.extract_strided_slice %5 {offsets = [8, 0], sizes = [8, 128], strides = [1, 1]} : vector<64x128xf32> to vector<8x128xf32>
    %36 = arith.truncf %34 : vector<8x32xf32> to vector<8x32xbf16>
    %cst_18 = arith.constant dense<0.000000e+00> : vector<8x128xf32>
    %37 = tpu.matmul %36, %6, %cst_18 {dimension_numbers = #tpu.dot_dimension_numbers<[1], [0], [0], [1], [0, 0, 1, 1], [], []>} : vector<8x32xbf16>, vector<32x128xbf16>, vector<8x128xf32> -> vector<8x128xf32>
    %38 = arith.addf %35, %37 : vector<8x128xf32>
    %39 = math.tanh %38 : vector<8x128xf32>
    %40 = vector.extract_strided_slice %39 {offsets = [0, 0], sizes = [8, 32], strides = [1, 1]} : vector<8x128xf32> to vector<8x32xf32>
    %cst_19 = arith.constant 1.000000e+00 : f32
    %41 = vector.broadcast %cst_19 : f32 to vector<8x32xf32>
    %42 = arith.addf %40, %41 : vector<8x32xf32>
    %cst_20 = arith.constant 5.000000e-01 : f32
    %43 = vector.broadcast %cst_20 : f32 to vector<8x32xf32>
    %44 = arith.mulf %43, %42 : vector<8x32xf32>
    %45 = vector.extract_strided_slice %39 {offsets = [0, 32], sizes = [8, 32], strides = [1, 1]} : vector<8x128xf32> to vector<8x32xf32>
    %cst_21 = arith.constant 1.000000e+00 : f32
    %46 = vector.broadcast %cst_21 : f32 to vector<8x32xf32>
    %47 = arith.addf %45, %46 : vector<8x32xf32>
    %cst_22 = arith.constant 5.000000e-01 : f32
    %48 = vector.broadcast %cst_22 : f32 to vector<8x32xf32>
    %49 = arith.mulf %48, %47 : vector<8x32xf32>
    %50 = vector.extract_strided_slice %39 {offsets = [0, 64], sizes = [8, 32], strides = [1, 1]} : vector<8x128xf32> to vector<8x32xf32>
    %51 = vector.extract_strided_slice %39 {offsets = [0, 96], sizes = [8, 32], strides = [1, 1]} : vector<8x128xf32> to vector<8x32xf32>
    %cst_23 = arith.constant 1.000000e+00 : f32
    %52 = vector.broadcast %cst_23 : f32 to vector<8x32xf32>
    %53 = arith.addf %51, %52 : vector<8x32xf32>
    %cst_24 = arith.constant 5.000000e-01 : f32
    %54 = vector.broadcast %cst_24 : f32 to vector<8x32xf32>
    %55 = arith.mulf %54, %53 : vector<8x32xf32>
    %56 = arith.mulf %49, %32 : vector<8x32xf32>
    %57 = arith.mulf %44, %50 : vector<8x32xf32>
    %58 = arith.addf %56, %57 : vector<8x32xf32>
    %59 = math.tanh %58 : vector<8x32xf32>
    %60 = arith.mulf %55, %59 : vector<8x32xf32>
    %61 = vector.extract_strided_slice %5 {offsets = [16, 0], sizes = [8, 128], strides = [1, 1]} : vector<64x128xf32> to vector<8x128xf32>
    %62 = arith.truncf %60 : vector<8x32xf32> to vector<8x32xbf16>
    %cst_25 = arith.constant dense<0.000000e+00> : vector<8x128xf32>
    %63 = tpu.matmul %62, %6, %cst_25 {dimension_numbers = #tpu.dot_dimension_numbers<[1], [0], [0], [1], [0, 0, 1, 1], [], []>} : vector<8x32xbf16>, vector<32x128xbf16>, vector<8x128xf32> -> vector<8x128xf32>
    %64 = arith.addf %61, %63 : vector<8x128xf32>
    %65 = math.tanh %64 : vector<8x128xf32>
    %66 = vector.extract_strided_slice %65 {offsets = [0, 0], sizes = [8, 32], strides = [1, 1]} : vector<8x128xf32> to vector<8x32xf32>
    %cst_26 = arith.constant 1.000000e+00 : f32
    %67 = vector.broadcast %cst_26 : f32 to vector<8x32xf32>
    %68 = arith.addf %66, %67 : vector<8x32xf32>
    %cst_27 = arith.constant 5.000000e-01 : f32
    %69 = vector.broadcast %cst_27 : f32 to vector<8x32xf32>
    %70 = arith.mulf %69, %68 : vector<8x32xf32>
    %71 = vector.extract_strided_slice %65 {offsets = [0, 32], sizes = [8, 32], strides = [1, 1]} : vector<8x128xf32> to vector<8x32xf32>
    %cst_28 = arith.constant 1.000000e+00 : f32
    %72 = vector.broadcast %cst_28 : f32 to vector<8x32xf32>
    %73 = arith.addf %71, %72 : vector<8x32xf32>
    %cst_29 = arith.constant 5.000000e-01 : f32
    %74 = vector.broadcast %cst_29 : f32 to vector<8x32xf32>
    %75 = arith.mulf %74, %73 : vector<8x32xf32>
    %76 = vector.extract_strided_slice %65 {offsets = [0, 64], sizes = [8, 32], strides = [1, 1]} : vector<8x128xf32> to vector<8x32xf32>
    %77 = vector.extract_strided_slice %65 {offsets = [0, 96], sizes = [8, 32], strides = [1, 1]} : vector<8x128xf32> to vector<8x32xf32>
    %cst_30 = arith.constant 1.000000e+00 : f32
    %78 = vector.broadcast %cst_30 : f32 to vector<8x32xf32>
    %79 = arith.addf %77, %78 : vector<8x32xf32>
    %cst_31 = arith.constant 5.000000e-01 : f32
    %80 = vector.broadcast %cst_31 : f32 to vector<8x32xf32>
    %81 = arith.mulf %80, %79 : vector<8x32xf32>
    %82 = arith.mulf %75, %58 : vector<8x32xf32>
    %83 = arith.mulf %70, %76 : vector<8x32xf32>
    %84 = arith.addf %82, %83 : vector<8x32xf32>
    %85 = math.tanh %84 : vector<8x32xf32>
    %86 = arith.mulf %81, %85 : vector<8x32xf32>
    %87 = vector.extract_strided_slice %5 {offsets = [24, 0], sizes = [8, 128], strides = [1, 1]} : vector<64x128xf32> to vector<8x128xf32>
    %88 = arith.truncf %86 : vector<8x32xf32> to vector<8x32xbf16>
    %cst_32 = arith.constant dense<0.000000e+00> : vector<8x128xf32>
    %89 = tpu.matmul %88, %6, %cst_32 {dimension_numbers = #tpu.dot_dimension_numbers<[1], [0], [0], [1], [0, 0, 1, 1], [], []>} : vector<8x32xbf16>, vector<32x128xbf16>, vector<8x128xf32> -> vector<8x128xf32>
    %90 = arith.addf %87, %89 : vector<8x128xf32>
    %91 = math.tanh %90 : vector<8x128xf32>
    %92 = vector.extract_strided_slice %91 {offsets = [0, 0], sizes = [8, 32], strides = [1, 1]} : vector<8x128xf32> to vector<8x32xf32>
    %cst_33 = arith.constant 1.000000e+00 : f32
    %93 = vector.broadcast %cst_33 : f32 to vector<8x32xf32>
    %94 = arith.addf %92, %93 : vector<8x32xf32>
    %cst_34 = arith.constant 5.000000e-01 : f32
    %95 = vector.broadcast %cst_34 : f32 to vector<8x32xf32>
    %96 = arith.mulf %95, %94 : vector<8x32xf32>
    %97 = vector.extract_strided_slice %91 {offsets = [0, 32], sizes = [8, 32], strides = [1, 1]} : vector<8x128xf32> to vector<8x32xf32>
    %cst_35 = arith.constant 1.000000e+00 : f32
    %98 = vector.broadcast %cst_35 : f32 to vector<8x32xf32>
    %99 = arith.addf %97, %98 : vector<8x32xf32>
    %cst_36 = arith.constant 5.000000e-01 : f32
    %100 = vector.broadcast %cst_36 : f32 to vector<8x32xf32>
    %101 = arith.mulf %100, %99 : vector<8x32xf32>
    %102 = vector.extract_strided_slice %91 {offsets = [0, 64], sizes = [8, 32], strides = [1, 1]} : vector<8x128xf32> to vector<8x32xf32>
    %103 = vector.extract_strided_slice %91 {offsets = [0, 96], sizes = [8, 32], strides = [1, 1]} : vector<8x128xf32> to vector<8x32xf32>
    %cst_37 = arith.constant 1.000000e+00 : f32
    %104 = vector.broadcast %cst_37 : f32 to vector<8x32xf32>
    %105 = arith.addf %103, %104 : vector<8x32xf32>
    %cst_38 = arith.constant 5.000000e-01 : f32
    %106 = vector.broadcast %cst_38 : f32 to vector<8x32xf32>
    %107 = arith.mulf %106, %105 : vector<8x32xf32>
    %108 = arith.mulf %101, %84 : vector<8x32xf32>
    %109 = arith.mulf %96, %102 : vector<8x32xf32>
    %110 = arith.addf %108, %109 : vector<8x32xf32>
    %111 = math.tanh %110 : vector<8x32xf32>
    %112 = arith.mulf %107, %111 : vector<8x32xf32>
    %113 = vector.extract_strided_slice %5 {offsets = [32, 0], sizes = [8, 128], strides = [1, 1]} : vector<64x128xf32> to vector<8x128xf32>
    %114 = arith.truncf %112 : vector<8x32xf32> to vector<8x32xbf16>
    %cst_39 = arith.constant dense<0.000000e+00> : vector<8x128xf32>
    %115 = tpu.matmul %114, %6, %cst_39 {dimension_numbers = #tpu.dot_dimension_numbers<[1], [0], [0], [1], [0, 0, 1, 1], [], []>} : vector<8x32xbf16>, vector<32x128xbf16>, vector<8x128xf32> -> vector<8x128xf32>
    %116 = arith.addf %113, %115 : vector<8x128xf32>
    %117 = math.tanh %116 : vector<8x128xf32>
    %118 = vector.extract_strided_slice %117 {offsets = [0, 0], sizes = [8, 32], strides = [1, 1]} : vector<8x128xf32> to vector<8x32xf32>
    %cst_40 = arith.constant 1.000000e+00 : f32
    %119 = vector.broadcast %cst_40 : f32 to vector<8x32xf32>
    %120 = arith.addf %118, %119 : vector<8x32xf32>
    %cst_41 = arith.constant 5.000000e-01 : f32
    %121 = vector.broadcast %cst_41 : f32 to vector<8x32xf32>
    %122 = arith.mulf %121, %120 : vector<8x32xf32>
    %123 = vector.extract_strided_slice %117 {offsets = [0, 32], sizes = [8, 32], strides = [1, 1]} : vector<8x128xf32> to vector<8x32xf32>
    %cst_42 = arith.constant 1.000000e+00 : f32
    %124 = vector.broadcast %cst_42 : f32 to vector<8x32xf32>
    %125 = arith.addf %123, %124 : vector<8x32xf32>
    %cst_43 = arith.constant 5.000000e-01 : f32
    %126 = vector.broadcast %cst_43 : f32 to vector<8x32xf32>
    %127 = arith.mulf %126, %125 : vector<8x32xf32>
    %128 = vector.extract_strided_slice %117 {offsets = [0, 64], sizes = [8, 32], strides = [1, 1]} : vector<8x128xf32> to vector<8x32xf32>
    %129 = vector.extract_strided_slice %117 {offsets = [0, 96], sizes = [8, 32], strides = [1, 1]} : vector<8x128xf32> to vector<8x32xf32>
    %cst_44 = arith.constant 1.000000e+00 : f32
    %130 = vector.broadcast %cst_44 : f32 to vector<8x32xf32>
    %131 = arith.addf %129, %130 : vector<8x32xf32>
    %cst_45 = arith.constant 5.000000e-01 : f32
    %132 = vector.broadcast %cst_45 : f32 to vector<8x32xf32>
    %133 = arith.mulf %132, %131 : vector<8x32xf32>
    %134 = arith.mulf %127, %110 : vector<8x32xf32>
    %135 = arith.mulf %122, %128 : vector<8x32xf32>
    %136 = arith.addf %134, %135 : vector<8x32xf32>
    %137 = math.tanh %136 : vector<8x32xf32>
    %138 = arith.mulf %133, %137 : vector<8x32xf32>
    %139 = vector.extract_strided_slice %5 {offsets = [40, 0], sizes = [8, 128], strides = [1, 1]} : vector<64x128xf32> to vector<8x128xf32>
    %140 = arith.truncf %138 : vector<8x32xf32> to vector<8x32xbf16>
    %cst_46 = arith.constant dense<0.000000e+00> : vector<8x128xf32>
    %141 = tpu.matmul %140, %6, %cst_46 {dimension_numbers = #tpu.dot_dimension_numbers<[1], [0], [0], [1], [0, 0, 1, 1], [], []>} : vector<8x32xbf16>, vector<32x128xbf16>, vector<8x128xf32> -> vector<8x128xf32>
    %142 = arith.addf %139, %141 : vector<8x128xf32>
    %143 = math.tanh %142 : vector<8x128xf32>
    %144 = vector.extract_strided_slice %143 {offsets = [0, 0], sizes = [8, 32], strides = [1, 1]} : vector<8x128xf32> to vector<8x32xf32>
    %cst_47 = arith.constant 1.000000e+00 : f32
    %145 = vector.broadcast %cst_47 : f32 to vector<8x32xf32>
    %146 = arith.addf %144, %145 : vector<8x32xf32>
    %cst_48 = arith.constant 5.000000e-01 : f32
    %147 = vector.broadcast %cst_48 : f32 to vector<8x32xf32>
    %148 = arith.mulf %147, %146 : vector<8x32xf32>
    %149 = vector.extract_strided_slice %143 {offsets = [0, 32], sizes = [8, 32], strides = [1, 1]} : vector<8x128xf32> to vector<8x32xf32>
    %cst_49 = arith.constant 1.000000e+00 : f32
    %150 = vector.broadcast %cst_49 : f32 to vector<8x32xf32>
    %151 = arith.addf %149, %150 : vector<8x32xf32>
    %cst_50 = arith.constant 5.000000e-01 : f32
    %152 = vector.broadcast %cst_50 : f32 to vector<8x32xf32>
    %153 = arith.mulf %152, %151 : vector<8x32xf32>
    %154 = vector.extract_strided_slice %143 {offsets = [0, 64], sizes = [8, 32], strides = [1, 1]} : vector<8x128xf32> to vector<8x32xf32>
    %155 = vector.extract_strided_slice %143 {offsets = [0, 96], sizes = [8, 32], strides = [1, 1]} : vector<8x128xf32> to vector<8x32xf32>
    %cst_51 = arith.constant 1.000000e+00 : f32
    %156 = vector.broadcast %cst_51 : f32 to vector<8x32xf32>
    %157 = arith.addf %155, %156 : vector<8x32xf32>
    %cst_52 = arith.constant 5.000000e-01 : f32
    %158 = vector.broadcast %cst_52 : f32 to vector<8x32xf32>
    %159 = arith.mulf %158, %157 : vector<8x32xf32>
    %160 = arith.mulf %153, %136 : vector<8x32xf32>
    %161 = arith.mulf %148, %154 : vector<8x32xf32>
    %162 = arith.addf %160, %161 : vector<8x32xf32>
    %163 = math.tanh %162 : vector<8x32xf32>
    %164 = arith.mulf %159, %163 : vector<8x32xf32>
    %165 = vector.extract_strided_slice %5 {offsets = [48, 0], sizes = [8, 128], strides = [1, 1]} : vector<64x128xf32> to vector<8x128xf32>
    %166 = arith.truncf %164 : vector<8x32xf32> to vector<8x32xbf16>
    %cst_53 = arith.constant dense<0.000000e+00> : vector<8x128xf32>
    %167 = tpu.matmul %166, %6, %cst_53 {dimension_numbers = #tpu.dot_dimension_numbers<[1], [0], [0], [1], [0, 0, 1, 1], [], []>} : vector<8x32xbf16>, vector<32x128xbf16>, vector<8x128xf32> -> vector<8x128xf32>
    %168 = arith.addf %165, %167 : vector<8x128xf32>
    %169 = math.tanh %168 : vector<8x128xf32>
    %170 = vector.extract_strided_slice %169 {offsets = [0, 0], sizes = [8, 32], strides = [1, 1]} : vector<8x128xf32> to vector<8x32xf32>
    %cst_54 = arith.constant 1.000000e+00 : f32
    %171 = vector.broadcast %cst_54 : f32 to vector<8x32xf32>
    %172 = arith.addf %170, %171 : vector<8x32xf32>
    %cst_55 = arith.constant 5.000000e-01 : f32
    %173 = vector.broadcast %cst_55 : f32 to vector<8x32xf32>
    %174 = arith.mulf %173, %172 : vector<8x32xf32>
    %175 = vector.extract_strided_slice %169 {offsets = [0, 32], sizes = [8, 32], strides = [1, 1]} : vector<8x128xf32> to vector<8x32xf32>
    %cst_56 = arith.constant 1.000000e+00 : f32
    %176 = vector.broadcast %cst_56 : f32 to vector<8x32xf32>
    %177 = arith.addf %175, %176 : vector<8x32xf32>
    %cst_57 = arith.constant 5.000000e-01 : f32
    %178 = vector.broadcast %cst_57 : f32 to vector<8x32xf32>
    %179 = arith.mulf %178, %177 : vector<8x32xf32>
    %180 = vector.extract_strided_slice %169 {offsets = [0, 64], sizes = [8, 32], strides = [1, 1]} : vector<8x128xf32> to vector<8x32xf32>
    %181 = vector.extract_strided_slice %169 {offsets = [0, 96], sizes = [8, 32], strides = [1, 1]} : vector<8x128xf32> to vector<8x32xf32>
    %cst_58 = arith.constant 1.000000e+00 : f32
    %182 = vector.broadcast %cst_58 : f32 to vector<8x32xf32>
    %183 = arith.addf %181, %182 : vector<8x32xf32>
    %cst_59 = arith.constant 5.000000e-01 : f32
    %184 = vector.broadcast %cst_59 : f32 to vector<8x32xf32>
    %185 = arith.mulf %184, %183 : vector<8x32xf32>
    %186 = arith.mulf %179, %162 : vector<8x32xf32>
    %187 = arith.mulf %174, %180 : vector<8x32xf32>
    %188 = arith.addf %186, %187 : vector<8x32xf32>
    %189 = math.tanh %188 : vector<8x32xf32>
    %190 = arith.mulf %185, %189 : vector<8x32xf32>
    %191 = vector.extract_strided_slice %5 {offsets = [56, 0], sizes = [8, 128], strides = [1, 1]} : vector<64x128xf32> to vector<8x128xf32>
    %192 = arith.truncf %190 : vector<8x32xf32> to vector<8x32xbf16>
    %cst_60 = arith.constant dense<0.000000e+00> : vector<8x128xf32>
    %193 = tpu.matmul %192, %6, %cst_60 {dimension_numbers = #tpu.dot_dimension_numbers<[1], [0], [0], [1], [0, 0, 1, 1], [], []>} : vector<8x32xbf16>, vector<32x128xbf16>, vector<8x128xf32> -> vector<8x128xf32>
    %194 = arith.addf %191, %193 : vector<8x128xf32>
    %195 = math.tanh %194 : vector<8x128xf32>
    %196 = vector.extract_strided_slice %195 {offsets = [0, 0], sizes = [8, 32], strides = [1, 1]} : vector<8x128xf32> to vector<8x32xf32>
    %cst_61 = arith.constant 1.000000e+00 : f32
    %197 = vector.broadcast %cst_61 : f32 to vector<8x32xf32>
    %198 = arith.addf %196, %197 : vector<8x32xf32>
    %cst_62 = arith.constant 5.000000e-01 : f32
    %199 = vector.broadcast %cst_62 : f32 to vector<8x32xf32>
    %200 = arith.mulf %199, %198 : vector<8x32xf32>
    %201 = vector.extract_strided_slice %195 {offsets = [0, 32], sizes = [8, 32], strides = [1, 1]} : vector<8x128xf32> to vector<8x32xf32>
    %cst_63 = arith.constant 1.000000e+00 : f32
    %202 = vector.broadcast %cst_63 : f32 to vector<8x32xf32>
    %203 = arith.addf %201, %202 : vector<8x32xf32>
    %cst_64 = arith.constant 5.000000e-01 : f32
    %204 = vector.broadcast %cst_64 : f32 to vector<8x32xf32>
    %205 = arith.mulf %204, %203 : vector<8x32xf32>
    %206 = vector.extract_strided_slice %195 {offsets = [0, 64], sizes = [8, 32], strides = [1, 1]} : vector<8x128xf32> to vector<8x32xf32>
    %207 = vector.extract_strided_slice %195 {offsets = [0, 96], sizes = [8, 32], strides = [1, 1]} : vector<8x128xf32> to vector<8x32xf32>
    %cst_65 = arith.constant 1.000000e+00 : f32
    %208 = vector.broadcast %cst_65 : f32 to vector<8x32xf32>
    %209 = arith.addf %207, %208 : vector<8x32xf32>
    %cst_66 = arith.constant 5.000000e-01 : f32
    %210 = vector.broadcast %cst_66 : f32 to vector<8x32xf32>
    %211 = arith.mulf %210, %209 : vector<8x32xf32>
    %212 = arith.mulf %205, %188 : vector<8x32xf32>
    %213 = arith.mulf %200, %206 : vector<8x32xf32>
    %214 = arith.addf %212, %213 : vector<8x32xf32>
    %215 = math.tanh %214 : vector<8x32xf32>
    %216 = arith.mulf %211, %215 : vector<8x32xf32>
    %217 = tpu.concatenate %34, %60, %86, %112, %138, %164, %190, %216 in 0 : vector<8x32xf32>, vector<8x32xf32>, vector<8x32xf32>, vector<8x32xf32>, vector<8x32xf32>, vector<8x32xf32>, vector<8x32xf32>, vector<8x32xf32> -> vector<64x32xf32>
    %c0_67 = arith.constant 0 : index
    %c0_68 = arith.constant 0 : index
    %218 = vector.load %arg4[%c0_67, %c0_68] : memref<32x128xf32, #tpu.memory_space<vmem>>, vector<32x128xf32>
    %cst_69 = arith.constant dense<0.000000e+00> : vector<64x128xf32>
    %219 = tpu.matmul %217, %218, %cst_69 {dimension_numbers = #tpu.dot_dimension_numbers<[1], [0], [0], [1], [0, 0, 1, 1], [], []>} : vector<64x32xf32>, vector<32x128xf32>, vector<64x128xf32> -> vector<64x128xf32>
    %c0_70 = arith.constant 0 : index
    %c0_71 = arith.constant 0 : index
    %220 = vector.load %arg6[%c0_70, %c0_71] : memref<1x128xf32, #tpu.memory_space<vmem>>, vector<1x128xf32>
    %221 = vector.broadcast %220 : vector<1x128xf32> to vector<64x128xf32>
    %222 = arith.addf %219, %221 : vector<64x128xf32>
    %c0_72 = arith.constant 0 : index
    %c0_73 = arith.constant 0 : index
    %223 = vector.load %arg5[%c0_72, %c0_73] : memref<32x128xbf16, #tpu.memory_space<vmem>>, vector<32x128xbf16>
    %c0_74 = arith.constant 0 : index
    %c0_75 = arith.constant 0 : index
    %224 = vector.load %arg11[%c0_74, %c0_75] : memref<8x32xf32, #tpu.memory_space<vmem>>, vector<8x32xf32>
    %c0_76 = arith.constant 0 : index
    %c0_77 = arith.constant 0 : index
    %225 = vector.load %arg12[%c0_76, %c0_77] : memref<8x32xf32, #tpu.memory_space<vmem>>, vector<8x32xf32>
    %226 = vector.extract_strided_slice %222 {offsets = [0, 0], sizes = [8, 128], strides = [1, 1]} : vector<64x128xf32> to vector<8x128xf32>
    %227 = arith.truncf %224 : vector<8x32xf32> to vector<8x32xbf16>
    %cst_78 = arith.constant dense<0.000000e+00> : vector<8x128xf32>
    %228 = tpu.matmul %227, %223, %cst_78 {dimension_numbers = #tpu.dot_dimension_numbers<[1], [0], [0], [1], [0, 0, 1, 1], [], []>} : vector<8x32xbf16>, vector<32x128xbf16>, vector<8x128xf32> -> vector<8x128xf32>
    %229 = arith.addf %226, %228 : vector<8x128xf32>
    %230 = math.tanh %229 : vector<8x128xf32>
    %231 = vector.extract_strided_slice %230 {offsets = [0, 0], sizes = [8, 32], strides = [1, 1]} : vector<8x128xf32> to vector<8x32xf32>
    %cst_79 = arith.constant 1.000000e+00 : f32
    %232 = vector.broadcast %cst_79 : f32 to vector<8x32xf32>
    %233 = arith.addf %231, %232 : vector<8x32xf32>
    %cst_80 = arith.constant 5.000000e-01 : f32
    %234 = vector.broadcast %cst_80 : f32 to vector<8x32xf32>
    %235 = arith.mulf %234, %233 : vector<8x32xf32>
    %236 = vector.extract_strided_slice %230 {offsets = [0, 32], sizes = [8, 32], strides = [1, 1]} : vector<8x128xf32> to vector<8x32xf32>
    %cst_81 = arith.constant 1.000000e+00 : f32
    %237 = vector.broadcast %cst_81 : f32 to vector<8x32xf32>
    %238 = arith.addf %236, %237 : vector<8x32xf32>
    %cst_82 = arith.constant 5.000000e-01 : f32
    %239 = vector.broadcast %cst_82 : f32 to vector<8x32xf32>
    %240 = arith.mulf %239, %238 : vector<8x32xf32>
    %241 = vector.extract_strided_slice %230 {offsets = [0, 64], sizes = [8, 32], strides = [1, 1]} : vector<8x128xf32> to vector<8x32xf32>
    %242 = vector.extract_strided_slice %230 {offsets = [0, 96], sizes = [8, 32], strides = [1, 1]} : vector<8x128xf32> to vector<8x32xf32>
    %cst_83 = arith.constant 1.000000e+00 : f32
    %243 = vector.broadcast %cst_83 : f32 to vector<8x32xf32>
    %244 = arith.addf %242, %243 : vector<8x32xf32>
    %cst_84 = arith.constant 5.000000e-01 : f32
    %245 = vector.broadcast %cst_84 : f32 to vector<8x32xf32>
    %246 = arith.mulf %245, %244 : vector<8x32xf32>
    %247 = arith.mulf %240, %225 : vector<8x32xf32>
    %248 = arith.mulf %235, %241 : vector<8x32xf32>
    %249 = arith.addf %247, %248 : vector<8x32xf32>
    %250 = math.tanh %249 : vector<8x32xf32>
    %251 = arith.mulf %246, %250 : vector<8x32xf32>
    %252 = vector.extract_strided_slice %222 {offsets = [8, 0], sizes = [8, 128], strides = [1, 1]} : vector<64x128xf32> to vector<8x128xf32>
    %253 = arith.truncf %251 : vector<8x32xf32> to vector<8x32xbf16>
    %cst_85 = arith.constant dense<0.000000e+00> : vector<8x128xf32>
    %254 = tpu.matmul %253, %223, %cst_85 {dimension_numbers = #tpu.dot_dimension_numbers<[1], [0], [0], [1], [0, 0, 1, 1], [], []>} : vector<8x32xbf16>, vector<32x128xbf16>, vector<8x128xf32> -> vector<8x128xf32>
    %255 = arith.addf %252, %254 : vector<8x128xf32>
    %256 = math.tanh %255 : vector<8x128xf32>
    %257 = vector.extract_strided_slice %256 {offsets = [0, 0], sizes = [8, 32], strides = [1, 1]} : vector<8x128xf32> to vector<8x32xf32>
    %cst_86 = arith.constant 1.000000e+00 : f32
    %258 = vector.broadcast %cst_86 : f32 to vector<8x32xf32>
    %259 = arith.addf %257, %258 : vector<8x32xf32>
    %cst_87 = arith.constant 5.000000e-01 : f32
    %260 = vector.broadcast %cst_87 : f32 to vector<8x32xf32>
    %261 = arith.mulf %260, %259 : vector<8x32xf32>
    %262 = vector.extract_strided_slice %256 {offsets = [0, 32], sizes = [8, 32], strides = [1, 1]} : vector<8x128xf32> to vector<8x32xf32>
    %cst_88 = arith.constant 1.000000e+00 : f32
    %263 = vector.broadcast %cst_88 : f32 to vector<8x32xf32>
    %264 = arith.addf %262, %263 : vector<8x32xf32>
    %cst_89 = arith.constant 5.000000e-01 : f32
    %265 = vector.broadcast %cst_89 : f32 to vector<8x32xf32>
    %266 = arith.mulf %265, %264 : vector<8x32xf32>
    %267 = vector.extract_strided_slice %256 {offsets = [0, 64], sizes = [8, 32], strides = [1, 1]} : vector<8x128xf32> to vector<8x32xf32>
    %268 = vector.extract_strided_slice %256 {offsets = [0, 96], sizes = [8, 32], strides = [1, 1]} : vector<8x128xf32> to vector<8x32xf32>
    %cst_90 = arith.constant 1.000000e+00 : f32
    %269 = vector.broadcast %cst_90 : f32 to vector<8x32xf32>
    %270 = arith.addf %268, %269 : vector<8x32xf32>
    %cst_91 = arith.constant 5.000000e-01 : f32
    %271 = vector.broadcast %cst_91 : f32 to vector<8x32xf32>
    %272 = arith.mulf %271, %270 : vector<8x32xf32>
    %273 = arith.mulf %266, %249 : vector<8x32xf32>
    %274 = arith.mulf %261, %267 : vector<8x32xf32>
    %275 = arith.addf %273, %274 : vector<8x32xf32>
    %276 = math.tanh %275 : vector<8x32xf32>
    %277 = arith.mulf %272, %276 : vector<8x32xf32>
    %278 = vector.extract_strided_slice %222 {offsets = [16, 0], sizes = [8, 128], strides = [1, 1]} : vector<64x128xf32> to vector<8x128xf32>
    %279 = arith.truncf %277 : vector<8x32xf32> to vector<8x32xbf16>
    %cst_92 = arith.constant dense<0.000000e+00> : vector<8x128xf32>
    %280 = tpu.matmul %279, %223, %cst_92 {dimension_numbers = #tpu.dot_dimension_numbers<[1], [0], [0], [1], [0, 0, 1, 1], [], []>} : vector<8x32xbf16>, vector<32x128xbf16>, vector<8x128xf32> -> vector<8x128xf32>
    %281 = arith.addf %278, %280 : vector<8x128xf32>
    %282 = math.tanh %281 : vector<8x128xf32>
    %283 = vector.extract_strided_slice %282 {offsets = [0, 0], sizes = [8, 32], strides = [1, 1]} : vector<8x128xf32> to vector<8x32xf32>
    %cst_93 = arith.constant 1.000000e+00 : f32
    %284 = vector.broadcast %cst_93 : f32 to vector<8x32xf32>
    %285 = arith.addf %283, %284 : vector<8x32xf32>
    %cst_94 = arith.constant 5.000000e-01 : f32
    %286 = vector.broadcast %cst_94 : f32 to vector<8x32xf32>
    %287 = arith.mulf %286, %285 : vector<8x32xf32>
    %288 = vector.extract_strided_slice %282 {offsets = [0, 32], sizes = [8, 32], strides = [1, 1]} : vector<8x128xf32> to vector<8x32xf32>
    %cst_95 = arith.constant 1.000000e+00 : f32
    %289 = vector.broadcast %cst_95 : f32 to vector<8x32xf32>
    %290 = arith.addf %288, %289 : vector<8x32xf32>
    %cst_96 = arith.constant 5.000000e-01 : f32
    %291 = vector.broadcast %cst_96 : f32 to vector<8x32xf32>
    %292 = arith.mulf %291, %290 : vector<8x32xf32>
    %293 = vector.extract_strided_slice %282 {offsets = [0, 64], sizes = [8, 32], strides = [1, 1]} : vector<8x128xf32> to vector<8x32xf32>
    %294 = vector.extract_strided_slice %282 {offsets = [0, 96], sizes = [8, 32], strides = [1, 1]} : vector<8x128xf32> to vector<8x32xf32>
    %cst_97 = arith.constant 1.000000e+00 : f32
    %295 = vector.broadcast %cst_97 : f32 to vector<8x32xf32>
    %296 = arith.addf %294, %295 : vector<8x32xf32>
    %cst_98 = arith.constant 5.000000e-01 : f32
    %297 = vector.broadcast %cst_98 : f32 to vector<8x32xf32>
    %298 = arith.mulf %297, %296 : vector<8x32xf32>
    %299 = arith.mulf %292, %275 : vector<8x32xf32>
    %300 = arith.mulf %287, %293 : vector<8x32xf32>
    %301 = arith.addf %299, %300 : vector<8x32xf32>
    %302 = math.tanh %301 : vector<8x32xf32>
    %303 = arith.mulf %298, %302 : vector<8x32xf32>
    %304 = vector.extract_strided_slice %222 {offsets = [24, 0], sizes = [8, 128], strides = [1, 1]} : vector<64x128xf32> to vector<8x128xf32>
    %305 = arith.truncf %303 : vector<8x32xf32> to vector<8x32xbf16>
    %cst_99 = arith.constant dense<0.000000e+00> : vector<8x128xf32>
    %306 = tpu.matmul %305, %223, %cst_99 {dimension_numbers = #tpu.dot_dimension_numbers<[1], [0], [0], [1], [0, 0, 1, 1], [], []>} : vector<8x32xbf16>, vector<32x128xbf16>, vector<8x128xf32> -> vector<8x128xf32>
    %307 = arith.addf %304, %306 : vector<8x128xf32>
    %308 = math.tanh %307 : vector<8x128xf32>
    %309 = vector.extract_strided_slice %308 {offsets = [0, 0], sizes = [8, 32], strides = [1, 1]} : vector<8x128xf32> to vector<8x32xf32>
    %cst_100 = arith.constant 1.000000e+00 : f32
    %310 = vector.broadcast %cst_100 : f32 to vector<8x32xf32>
    %311 = arith.addf %309, %310 : vector<8x32xf32>
    %cst_101 = arith.constant 5.000000e-01 : f32
    %312 = vector.broadcast %cst_101 : f32 to vector<8x32xf32>
    %313 = arith.mulf %312, %311 : vector<8x32xf32>
    %314 = vector.extract_strided_slice %308 {offsets = [0, 32], sizes = [8, 32], strides = [1, 1]} : vector<8x128xf32> to vector<8x32xf32>
    %cst_102 = arith.constant 1.000000e+00 : f32
    %315 = vector.broadcast %cst_102 : f32 to vector<8x32xf32>
    %316 = arith.addf %314, %315 : vector<8x32xf32>
    %cst_103 = arith.constant 5.000000e-01 : f32
    %317 = vector.broadcast %cst_103 : f32 to vector<8x32xf32>
    %318 = arith.mulf %317, %316 : vector<8x32xf32>
    %319 = vector.extract_strided_slice %308 {offsets = [0, 64], sizes = [8, 32], strides = [1, 1]} : vector<8x128xf32> to vector<8x32xf32>
    %320 = vector.extract_strided_slice %308 {offsets = [0, 96], sizes = [8, 32], strides = [1, 1]} : vector<8x128xf32> to vector<8x32xf32>
    %cst_104 = arith.constant 1.000000e+00 : f32
    %321 = vector.broadcast %cst_104 : f32 to vector<8x32xf32>
    %322 = arith.addf %320, %321 : vector<8x32xf32>
    %cst_105 = arith.constant 5.000000e-01 : f32
    %323 = vector.broadcast %cst_105 : f32 to vector<8x32xf32>
    %324 = arith.mulf %323, %322 : vector<8x32xf32>
    %325 = arith.mulf %318, %301 : vector<8x32xf32>
    %326 = arith.mulf %313, %319 : vector<8x32xf32>
    %327 = arith.addf %325, %326 : vector<8x32xf32>
    %328 = math.tanh %327 : vector<8x32xf32>
    %329 = arith.mulf %324, %328 : vector<8x32xf32>
    %330 = vector.extract_strided_slice %222 {offsets = [32, 0], sizes = [8, 128], strides = [1, 1]} : vector<64x128xf32> to vector<8x128xf32>
    %331 = arith.truncf %329 : vector<8x32xf32> to vector<8x32xbf16>
    %cst_106 = arith.constant dense<0.000000e+00> : vector<8x128xf32>
    %332 = tpu.matmul %331, %223, %cst_106 {dimension_numbers = #tpu.dot_dimension_numbers<[1], [0], [0], [1], [0, 0, 1, 1], [], []>} : vector<8x32xbf16>, vector<32x128xbf16>, vector<8x128xf32> -> vector<8x128xf32>
    %333 = arith.addf %330, %332 : vector<8x128xf32>
    %334 = math.tanh %333 : vector<8x128xf32>
    %335 = vector.extract_strided_slice %334 {offsets = [0, 0], sizes = [8, 32], strides = [1, 1]} : vector<8x128xf32> to vector<8x32xf32>
    %cst_107 = arith.constant 1.000000e+00 : f32
    %336 = vector.broadcast %cst_107 : f32 to vector<8x32xf32>
    %337 = arith.addf %335, %336 : vector<8x32xf32>
    %cst_108 = arith.constant 5.000000e-01 : f32
    %338 = vector.broadcast %cst_108 : f32 to vector<8x32xf32>
    %339 = arith.mulf %338, %337 : vector<8x32xf32>
    %340 = vector.extract_strided_slice %334 {offsets = [0, 32], sizes = [8, 32], strides = [1, 1]} : vector<8x128xf32> to vector<8x32xf32>
    %cst_109 = arith.constant 1.000000e+00 : f32
    %341 = vector.broadcast %cst_109 : f32 to vector<8x32xf32>
    %342 = arith.addf %340, %341 : vector<8x32xf32>
    %cst_110 = arith.constant 5.000000e-01 : f32
    %343 = vector.broadcast %cst_110 : f32 to vector<8x32xf32>
    %344 = arith.mulf %343, %342 : vector<8x32xf32>
    %345 = vector.extract_strided_slice %334 {offsets = [0, 64], sizes = [8, 32], strides = [1, 1]} : vector<8x128xf32> to vector<8x32xf32>
    %346 = vector.extract_strided_slice %334 {offsets = [0, 96], sizes = [8, 32], strides = [1, 1]} : vector<8x128xf32> to vector<8x32xf32>
    %cst_111 = arith.constant 1.000000e+00 : f32
    %347 = vector.broadcast %cst_111 : f32 to vector<8x32xf32>
    %348 = arith.addf %346, %347 : vector<8x32xf32>
    %cst_112 = arith.constant 5.000000e-01 : f32
    %349 = vector.broadcast %cst_112 : f32 to vector<8x32xf32>
    %350 = arith.mulf %349, %348 : vector<8x32xf32>
    %351 = arith.mulf %344, %327 : vector<8x32xf32>
    %352 = arith.mulf %339, %345 : vector<8x32xf32>
    %353 = arith.addf %351, %352 : vector<8x32xf32>
    %354 = math.tanh %353 : vector<8x32xf32>
    %355 = arith.mulf %350, %354 : vector<8x32xf32>
    %356 = vector.extract_strided_slice %222 {offsets = [40, 0], sizes = [8, 128], strides = [1, 1]} : vector<64x128xf32> to vector<8x128xf32>
    %357 = arith.truncf %355 : vector<8x32xf32> to vector<8x32xbf16>
    %cst_113 = arith.constant dense<0.000000e+00> : vector<8x128xf32>
    %358 = tpu.matmul %357, %223, %cst_113 {dimension_numbers = #tpu.dot_dimension_numbers<[1], [0], [0], [1], [0, 0, 1, 1], [], []>} : vector<8x32xbf16>, vector<32x128xbf16>, vector<8x128xf32> -> vector<8x128xf32>
    %359 = arith.addf %356, %358 : vector<8x128xf32>
    %360 = math.tanh %359 : vector<8x128xf32>
    %361 = vector.extract_strided_slice %360 {offsets = [0, 0], sizes = [8, 32], strides = [1, 1]} : vector<8x128xf32> to vector<8x32xf32>
    %cst_114 = arith.constant 1.000000e+00 : f32
    %362 = vector.broadcast %cst_114 : f32 to vector<8x32xf32>
    %363 = arith.addf %361, %362 : vector<8x32xf32>
    %cst_115 = arith.constant 5.000000e-01 : f32
    %364 = vector.broadcast %cst_115 : f32 to vector<8x32xf32>
    %365 = arith.mulf %364, %363 : vector<8x32xf32>
    %366 = vector.extract_strided_slice %360 {offsets = [0, 32], sizes = [8, 32], strides = [1, 1]} : vector<8x128xf32> to vector<8x32xf32>
    %cst_116 = arith.constant 1.000000e+00 : f32
    %367 = vector.broadcast %cst_116 : f32 to vector<8x32xf32>
    %368 = arith.addf %366, %367 : vector<8x32xf32>
    %cst_117 = arith.constant 5.000000e-01 : f32
    %369 = vector.broadcast %cst_117 : f32 to vector<8x32xf32>
    %370 = arith.mulf %369, %368 : vector<8x32xf32>
    %371 = vector.extract_strided_slice %360 {offsets = [0, 64], sizes = [8, 32], strides = [1, 1]} : vector<8x128xf32> to vector<8x32xf32>
    %372 = vector.extract_strided_slice %360 {offsets = [0, 96], sizes = [8, 32], strides = [1, 1]} : vector<8x128xf32> to vector<8x32xf32>
    %cst_118 = arith.constant 1.000000e+00 : f32
    %373 = vector.broadcast %cst_118 : f32 to vector<8x32xf32>
    %374 = arith.addf %372, %373 : vector<8x32xf32>
    %cst_119 = arith.constant 5.000000e-01 : f32
    %375 = vector.broadcast %cst_119 : f32 to vector<8x32xf32>
    %376 = arith.mulf %375, %374 : vector<8x32xf32>
    %377 = arith.mulf %370, %353 : vector<8x32xf32>
    %378 = arith.mulf %365, %371 : vector<8x32xf32>
    %379 = arith.addf %377, %378 : vector<8x32xf32>
    %380 = math.tanh %379 : vector<8x32xf32>
    %381 = arith.mulf %376, %380 : vector<8x32xf32>
    %382 = vector.extract_strided_slice %222 {offsets = [48, 0], sizes = [8, 128], strides = [1, 1]} : vector<64x128xf32> to vector<8x128xf32>
    %383 = arith.truncf %381 : vector<8x32xf32> to vector<8x32xbf16>
    %cst_120 = arith.constant dense<0.000000e+00> : vector<8x128xf32>
    %384 = tpu.matmul %383, %223, %cst_120 {dimension_numbers = #tpu.dot_dimension_numbers<[1], [0], [0], [1], [0, 0, 1, 1], [], []>} : vector<8x32xbf16>, vector<32x128xbf16>, vector<8x128xf32> -> vector<8x128xf32>
    %385 = arith.addf %382, %384 : vector<8x128xf32>
    %386 = math.tanh %385 : vector<8x128xf32>
    %387 = vector.extract_strided_slice %386 {offsets = [0, 0], sizes = [8, 32], strides = [1, 1]} : vector<8x128xf32> to vector<8x32xf32>
    %cst_121 = arith.constant 1.000000e+00 : f32
    %388 = vector.broadcast %cst_121 : f32 to vector<8x32xf32>
    %389 = arith.addf %387, %388 : vector<8x32xf32>
    %cst_122 = arith.constant 5.000000e-01 : f32
    %390 = vector.broadcast %cst_122 : f32 to vector<8x32xf32>
    %391 = arith.mulf %390, %389 : vector<8x32xf32>
    %392 = vector.extract_strided_slice %386 {offsets = [0, 32], sizes = [8, 32], strides = [1, 1]} : vector<8x128xf32> to vector<8x32xf32>
    %cst_123 = arith.constant 1.000000e+00 : f32
    %393 = vector.broadcast %cst_123 : f32 to vector<8x32xf32>
    %394 = arith.addf %392, %393 : vector<8x32xf32>
    %cst_124 = arith.constant 5.000000e-01 : f32
    %395 = vector.broadcast %cst_124 : f32 to vector<8x32xf32>
    %396 = arith.mulf %395, %394 : vector<8x32xf32>
    %397 = vector.extract_strided_slice %386 {offsets = [0, 64], sizes = [8, 32], strides = [1, 1]} : vector<8x128xf32> to vector<8x32xf32>
    %398 = vector.extract_strided_slice %386 {offsets = [0, 96], sizes = [8, 32], strides = [1, 1]} : vector<8x128xf32> to vector<8x32xf32>
    %cst_125 = arith.constant 1.000000e+00 : f32
    %399 = vector.broadcast %cst_125 : f32 to vector<8x32xf32>
    %400 = arith.addf %398, %399 : vector<8x32xf32>
    %cst_126 = arith.constant 5.000000e-01 : f32
    %401 = vector.broadcast %cst_126 : f32 to vector<8x32xf32>
    %402 = arith.mulf %401, %400 : vector<8x32xf32>
    %403 = arith.mulf %396, %379 : vector<8x32xf32>
    %404 = arith.mulf %391, %397 : vector<8x32xf32>
    %405 = arith.addf %403, %404 : vector<8x32xf32>
    %406 = math.tanh %405 : vector<8x32xf32>
    %407 = arith.mulf %402, %406 : vector<8x32xf32>
    %408 = vector.extract_strided_slice %222 {offsets = [56, 0], sizes = [8, 128], strides = [1, 1]} : vector<64x128xf32> to vector<8x128xf32>
    %409 = arith.truncf %407 : vector<8x32xf32> to vector<8x32xbf16>
    %cst_127 = arith.constant dense<0.000000e+00> : vector<8x128xf32>
    %410 = tpu.matmul %409, %223, %cst_127 {dimension_numbers = #tpu.dot_dimension_numbers<[1], [0], [0], [1], [0, 0, 1, 1], [], []>} : vector<8x32xbf16>, vector<32x128xbf16>, vector<8x128xf32> -> vector<8x128xf32>
    %411 = arith.addf %408, %410 : vector<8x128xf32>
    %412 = math.tanh %411 : vector<8x128xf32>
    %413 = vector.extract_strided_slice %412 {offsets = [0, 0], sizes = [8, 32], strides = [1, 1]} : vector<8x128xf32> to vector<8x32xf32>
    %cst_128 = arith.constant 1.000000e+00 : f32
    %414 = vector.broadcast %cst_128 : f32 to vector<8x32xf32>
    %415 = arith.addf %413, %414 : vector<8x32xf32>
    %cst_129 = arith.constant 5.000000e-01 : f32
    %416 = vector.broadcast %cst_129 : f32 to vector<8x32xf32>
    %417 = arith.mulf %416, %415 : vector<8x32xf32>
    %418 = vector.extract_strided_slice %412 {offsets = [0, 32], sizes = [8, 32], strides = [1, 1]} : vector<8x128xf32> to vector<8x32xf32>
    %cst_130 = arith.constant 1.000000e+00 : f32
    %419 = vector.broadcast %cst_130 : f32 to vector<8x32xf32>
    %420 = arith.addf %418, %419 : vector<8x32xf32>
    %cst_131 = arith.constant 5.000000e-01 : f32
    %421 = vector.broadcast %cst_131 : f32 to vector<8x32xf32>
    %422 = arith.mulf %421, %420 : vector<8x32xf32>
    %423 = vector.extract_strided_slice %412 {offsets = [0, 64], sizes = [8, 32], strides = [1, 1]} : vector<8x128xf32> to vector<8x32xf32>
    %424 = vector.extract_strided_slice %412 {offsets = [0, 96], sizes = [8, 32], strides = [1, 1]} : vector<8x128xf32> to vector<8x32xf32>
    %cst_132 = arith.constant 1.000000e+00 : f32
    %425 = vector.broadcast %cst_132 : f32 to vector<8x32xf32>
    %426 = arith.addf %424, %425 : vector<8x32xf32>
    %cst_133 = arith.constant 5.000000e-01 : f32
    %427 = vector.broadcast %cst_133 : f32 to vector<8x32xf32>
    %428 = arith.mulf %427, %426 : vector<8x32xf32>
    %429 = arith.mulf %422, %405 : vector<8x32xf32>
    %430 = arith.mulf %417, %423 : vector<8x32xf32>
    %431 = arith.addf %429, %430 : vector<8x32xf32>
    %432 = math.tanh %431 : vector<8x32xf32>
    %433 = arith.mulf %428, %432 : vector<8x32xf32>
    %434 = tpu.concatenate %251, %277, %303, %329, %355, %381, %407, %433 in 0 : vector<8x32xf32>, vector<8x32xf32>, vector<8x32xf32>, vector<8x32xf32>, vector<8x32xf32>, vector<8x32xf32>, vector<8x32xf32>, vector<8x32xf32> -> vector<64x32xf32>
    %c0_134 = arith.constant 0 : index
    %c0_135 = arith.constant 0 : index
    %435 = vector.load %arg7[%c0_134, %c0_135] : memref<32x128xf32, #tpu.memory_space<vmem>>, vector<32x128xf32>
    %cst_136 = arith.constant dense<0.000000e+00> : vector<64x128xf32>
    %436 = tpu.matmul %434, %435, %cst_136 {dimension_numbers = #tpu.dot_dimension_numbers<[1], [0], [0], [1], [0, 0, 1, 1], [], []>} : vector<64x32xf32>, vector<32x128xf32>, vector<64x128xf32> -> vector<64x128xf32>
    %c0_137 = arith.constant 0 : index
    %c0_138 = arith.constant 0 : index
    %437 = vector.load %arg8[%c0_137, %c0_138] : memref<1x128xf32, #tpu.memory_space<vmem>>, vector<1x128xf32>
    %438 = vector.broadcast %437 : vector<1x128xf32> to vector<64x128xf32>
    %439 = arith.addf %436, %438 : vector<64x128xf32>
    %cst_139 = arith.constant 0.000000e+00 : f32
    %440 = vector.broadcast %cst_139 : f32 to vector<64x128xf32>
    %441 = arith.maximumf %439, %440 : vector<64x128xf32>
    %c0_140 = arith.constant 0 : index
    %c0_141 = arith.constant 0 : index
    %442 = vector.load %arg13[%c0_140, %c0_141] : memref<64x128xf32, #tpu.memory_space<vmem>>, vector<64x128xf32>
    tpu.vector_store %arg13[%c0_140, %c0_141], %441 {strides = array<i32>} : memref<64x128xf32, #tpu.memory_space<vmem>>, vector<64x128xf32>,
    return
  }
}

</mosaic_0001>

<llo_original>
// kernel: eeg_lstm_forward.1
$region0: #{eeg_lstm_forward.1}
  #allocation0 [shape = 'u32[]', space=smem, size = 0x4, offset = 0x4, fixed_abs, tag = 'smem constant byte address 0x4 - core index']
  #allocation1 [shape = 'u32[72,128]{1,0:T(1,128)}', space=vmem, size = 0x9000, scoped, tag = 'internal scratch']
  %s0 = inlined_call_operand.vmem [shape: f32[64,32], index: 0, kind: input, shape index: {}]
  %s1 = inlined_call_operand.vmem [shape: f32[32,128], index: 1, kind: input, shape index: {}]
  %s2 = inlined_call_operand.vmem [shape: bf16[32,128], index: 2, kind: input, shape index: {}]
  %s3 = inlined_call_operand.vmem [shape: f32[1,128], index: 3, kind: input, shape index: {}]
  %s4 = inlined_call_operand.vmem [shape: f32[32,128], index: 4, kind: input, shape index: {}]
  %s5 = inlined_call_operand.hbm [shape: bf16[32,128], index: 5, kind: input, shape index: {}]
  %s6 = inlined_call_operand.vmem [shape: f32[1,128], index: 6, kind: input, shape index: {}]
  %s7 = inlined_call_operand.vmem [shape: f32[32,128], index: 7, kind: input, shape index: {}]
  %s8 = inlined_call_operand.vmem [shape: f32[1,128], index: 8, kind: input, shape index: {}]
  %s9 = inlined_call_operand.vmem [shape: f32[8,32], index: 9, kind: input, shape index: {}]
  %s10 = inlined_call_operand.vmem [shape: f32[8,32], index: 10, kind: input, shape index: {}]
  %s11 = inlined_call_operand.vmem [shape: f32[8,32], index: 11, kind: input, shape index: {}]
  %s12 = inlined_call_operand.vmem [shape: f32[8,32], index: 12, kind: input, shape index: {}]
  %s13 = inlined_call_operand.vmem [shape: f32[64,128], index: 13, kind: output, shape index: {}]
  %s14 = sld [smem:[#allocation0]]
  $region66: #{eeg_lstm_forward.1} parent=0
    _
  %s16 = ssub.s32 1, %s14
  %s17 = scalar_select 0, %s16, %s14
  $region1: #{eeg_lstm_forward.1} parent=0
    #allocation2 [shape = 'u8[8192]{0}', space=vmem, size = 0x2000, scoped, tag = 'input window, operand 5, single buffered']
    #allocation3 [shape = 's32[1]{0}', space=sflag, size = 0x4, scoped, tag = 'scoped memory for eeg_lstm_forward.1']
    %18 = vsyncpa [#allocation3], 0
    // Predicated region
    $region2: #{eeg_lstm_forward.1} parent=1 // pred_check
      _
    $region3: #{eeg_lstm_forward.1} parent=1 // pred_check_branch
      %20 = sbr.rel (0) target = $region5
    $region4: #{eeg_lstm_forward.1} parent=1 // pred_region
      _
    $region5: #{eeg_lstm_forward.1} parent=1 // pred_fallthru
      _
    // Predicated region
    $region6: #{eeg_lstm_forward.1} parent=1 // pred_check
      _
    $region7: #{eeg_lstm_forward.1} parent=1 // pred_check_branch
      %22 = sbr.rel (0) target = $region9
    $region8: #{eeg_lstm_forward.1} parent=1 // pred_region
      _
    $region9: #{eeg_lstm_forward.1} parent=1 // pred_fallthru
      _
    // Predicated region
    $region10: #{eeg_lstm_forward.1} parent=1 // pred_check
      _
    $region11: #{eeg_lstm_forward.1} parent=1 // pred_check_branch
      %24 = sbr.rel (0) target = $region13
    $region12: #{eeg_lstm_forward.1} parent=1 // pred_region
      _
    $region13: #{eeg_lstm_forward.1} parent=1 // pred_fallthru
      _
    // Predicated region
    $region14: #{eeg_lstm_forward.1} parent=1 // pred_check
      _
    $region15: #{eeg_lstm_forward.1} parent=1 // pred_check_branch
      %26 = sbr.rel (0) target = $region17
    $region16: #{eeg_lstm_forward.1} parent=1 // pred_region
      _
    $region17: #{eeg_lstm_forward.1} parent=1 // pred_fallthru
      _
    // Predicated region
    $region18: #{eeg_lstm_forward.1} parent=1 // pred_check
      _
    $region19: #{eeg_lstm_forward.1} parent=1 // pred_check_branch
      %28 = sbr.rel (0) target = $region21
    $region20: #{eeg_lstm_forward.1} parent=1 // pred_region
      _
    $region21: #{eeg_lstm_forward.1} parent=1 // pred_fallthru
      _
    // Predicated region
    $region22: #{eeg_lstm_forward.1} parent=1 // pred_check
      _
    $region23: #{eeg_lstm_forward.1} parent=1 // pred_check_branch
      %30 = sbr.rel (0) target = $region25
    $region24: #{eeg_lstm_forward.1} parent=1 // pred_region
      %32 = vsyncadd [#allocation3], 0
      %s33 = sshll.u32 %s5, 4
      %s34 = int_to_ptr.hbm [resolvable:$true] %s33
      %s35 = sshll.u32 [#allocation2], 4
      %s36 = int_to_ptr.vmem [resolvable:$true] %s35
      %41 = dma.hbm_to_vmem [thread:$0]  %s34, 256, %s36, [#allocation3], 64, 64, 4
    $region25: #{eeg_lstm_forward.1} parent=1 // pred_fallthru
      _
    // Predicated region
    $region26: #{eeg_lstm_forward.1} parent=1 // pred_check
      _
    $region27: #{eeg_lstm_forward.1} parent=1 // pred_check_branch
      %43 = sbr.rel (0) target = $region29
    $region28: #{eeg_lstm_forward.1} parent=1 // pred_region
      _
    $region29: #{eeg_lstm_forward.1} parent=1 // pred_fallthru
      _
    // Predicated region
    $region30: #{eeg_lstm_forward.1} parent=1 // pred_check
      _
    $region31: #{eeg_lstm_forward.1} parent=1 // pred_check_branch
      %45 = sbr.rel (0) target = $region33
    $region32: #{eeg_lstm_forward.1} parent=1 // pred_region
      _
    $region33: #{eeg_lstm_forward.1} parent=1 // pred_fallthru
      _
    // Predicated region
    $region34: #{eeg_lstm_forward.1} parent=1 // pred_check
      _
    $region35: #{eeg_lstm_forward.1} parent=1 // pred_check_branch
      %47 = sbr.rel (0) target = $region37
    $region36: #{eeg_lstm_forward.1} parent=1 // pred_region
      _
    $region37: #{eeg_lstm_forward.1} parent=1 // pred_fallthru
      _
    // Predicated region
    $region38: #{eeg_lstm_forward.1} parent=1 // pred_check
      _
    $region39: #{eeg_lstm_forward.1} parent=1 // pred_check_branch
      %49 = sbr.rel (0) target = $region41
    $region40: #{eeg_lstm_forward.1} parent=1 // pred_region
      _
    $region41: #{eeg_lstm_forward.1} parent=1 // pred_fallthru
      _
    // Predicated region
    $region42: #{eeg_lstm_forward.1} parent=1 // pred_check
      _
    $region43: #{eeg_lstm_forward.1} parent=1 // pred_check_branch
      %51 = sbr.rel (0) target = $region45
    $region44: #{eeg_lstm_forward.1} parent=1 // pred_region
      _
    $region45: #{eeg_lstm_forward.1} parent=1 // pred_fallthru
      _
    // Predicated region
    $region46: #{eeg_lstm_forward.1} parent=1 // pred_check
      _
    $region47: #{eeg_lstm_forward.1} parent=1 // pred_check_branch
      %53 = sbr.rel (0) target = $region49
    $region48: #{eeg_lstm_forward.1} parent=1 // pred_region
      _
    $region49: #{eeg_lstm_forward.1} parent=1 // pred_fallthru
      _
    // Predicated region
    $region50: #{eeg_lstm_forward.1} parent=1 // pred_check
      _
    $region51: #{eeg_lstm_forward.1} parent=1 // pred_check_branch
      %55 = sbr.rel (0) target = $region53
    $region52: #{eeg_lstm_forward.1} parent=1 // pred_region
      _
    $region53: #{eeg_lstm_forward.1} parent=1 // pred_fallthru
      _
    // Predicated region
    $region54: #{eeg_lstm_forward.1} parent=1 // pred_check
      _
    $region55: #{eeg_lstm_forward.1} parent=1 // pred_check_branch
      %57 = sbr.rel (0) target = $region57
    $region56: #{eeg_lstm_forward.1} parent=1 // pred_region
      %59 = dma.done [#allocation3], 256
    $region57: #{eeg_lstm_forward.1} parent=1 // pred_fallthru
      _
    %v61 = vld [vmem:[%s0] sm:$0xff]
    %v62 = vld [vmem:[%s0 + $0x8] sm:$0xff]
    %v63 = vld [vmem:[%s0 + $0x10] sm:$0xff]
    %v64 = vld [vmem:[%s0 + $0x18] sm:$0xff]
    %v65 = vld [vmem:[%s0 + $0x20] sm:$0xff]
    %v66 = vld [vmem:[%s0 + $0x28] sm:$0xff]
    %v67 = vld [vmem:[%s0 + $0x30] sm:$0xff]
    %v68 = vld [vmem:[%s0 + $0x38] sm:$0xff]
    %v69 = vld [vmem:[%s1] sm:$0xff]
    %v70 = vld [vmem:[%s1 + $0x8] sm:$0xff]
    %v71 = vld [vmem:[%s1 + $0x10] sm:$0xff]
    %v72 = vld [vmem:[%s1 + $0x18] sm:$0xff]
    %v73 = vld [vmem:[%s3] sm:$0x1]
    %v75 = vperm.slane %v73, 0
    %vm77 = vcmask 261120
    %v79 = vsel %vm77, %v61, 0
    %v82 = vsel %vm77, %v62, 0
    %v85 = vsel %vm77, %v63, 0
    %v88 = vsel %vm77, %v64, 0
    %v91 = vsel %vm77, %v65, 0
    %v94 = vsel %vm77, %v66, 0
    %v97 = vsel %vm77, %v67, 0
    %v100 = vsel %vm77, %v68, 0
    %102 = vmatpush.msra.mxu0 0.0
    %103 = vmatpush.msra.mxu0 0.0
    %104 = vmatpush.msra.mxu0 0.0
    %105 = vmatpush.msra.mxu0 0.0
    %106 = vmatpush.msra.mxu0 0.0
    %107 = vmatpush.msra.mxu0 0.0
    %108 = vmatpush.msra.mxu0 0.0
    %109 = vmatpush.msra.mxu0 0.0
    %110 = vmatpush.msra.mxu0 0.0
    %111 = vmatpush.msra.mxu0 0.0
    %112 = vmatpush.msra.mxu0 0.0
    %113 = vmatpush.msra.mxu0 0.0
    %114 = vmatpush.msra.mxu0 %v72
    %115 = vmatpush.msra.mxu0 %v71
    %116 = vmatpush.msra.mxu0 %v70
    %117 = vmatpush.msra.mxu0 %v69
    %118 = vmatmul.f32.gmra.mxu0 %v79
    %v119 = vpop.f32.mrf.mxu0
    %v120 = vadd.f32 %v75, %v119
    %121 = vmatmul.f32.gmra.mxu0 %v82
    %v122 = vpop.f32.mrf.mxu0
    %v123 = vadd.f32 %v75, %v122
    %124 = vmatmul.f32.gmra.mxu0 %v85
    %v125 = vpop.f32.mrf.mxu0
    %v126 = vadd.f32 %v75, %v125
    %127 = vmatmul.f32.gmra.mxu0 %v88
    %v128 = vpop.f32.mrf.mxu0
    %v129 = vadd.f32 %v75, %v128
    %130 = vmatmul.f32.gmra.mxu0 %v91
    %v131 = vpop.f32.mrf.mxu0
    %v132 = vadd.f32 %v75, %v131
    %133 = vmatmul.f32.gmra.mxu0 %v94
    %v134 = vpop.f32.mrf.mxu0
    %v135 = vadd.f32 %v75, %v134
    %136 = vmatmul.f32.gmra.mxu0 %v97
    %v137 = vpop.f32.mrf.mxu0
    %v138 = vadd.f32 %v75, %v137
    %139 = vmatmul.f32.gmra.mxu0 %v100
    %v140 = vpop.f32.mrf.mxu0
    %v141 = vadd.f32 %v75, %v140
    %142 = vdwg.mxu0
    %v143 = vld [vmem:[%s2] sm:$0xf]
    %v144 = vld [vmem:[%s2 + $0x4] sm:$0xf]
    %v145 = vld [vmem:[%s2 + $0x8] sm:$0xf]
    %v146 = vld [vmem:[%s2 + $0xc] sm:$0xf]
    %v147 = vld [vmem:[%s9] sm:$0xff]
    %v148 = vld [vmem:[%s10] sm:$0xff]
    %v149 = vpack.c.bf16 %v147, %v147
    %v154 = vunpack.c.l.b16 %v143
    %v155 = vunpack.c.l.b16 %v144
    %v156 = vunpack.c.l.b16 %v145
    %v157 = vunpack.c.l.b16 %v146
    %v158 = vpack.c.b16 %v155, %v154
    %v159 = vpack.c.b16 %v157, %v156
    %v163 = vsel %vm77, %v149, 0
    %165 = vmatpush.bf16.msra.mxu0 0
    %166 = vmatpush.bf16.msra.mxu0 0
    %167 = vmatpush.bf16.msra.mxu0 0
    %168 = vmatpush.bf16.msra.mxu0 0
    %169 = vmatpush.bf16.msra.mxu0 0
    %170 = vmatpush.bf16.msra.mxu0 0
    %171 = vmatpush.bf16.msra.mxu0 %v159
    %172 = vmatpush.bf16.msra.mxu0 %v158
    %173 = vmatmul.bf16.gmra.mxu0 %v163
    %v174 = vpop.f32.mrf.mxu0
    %v175 = vadd.f32 0.0, %v174
    %v176 = vpop.f32.mrf.mxu0
    %177 = vdwg.mxu0
    %v178 = vadd.f32 %v120, %v175
    %v179 = vtanh.pop %v178
    %v180 = vadd.f32 %v179, 1.0
    %v181 = vmul.f32 %v180, 0.5
    %183 = vrot.lane.b32.xlu0 %v148, 32
    %v184 = vpop.permute.xlu0 %183
    %v186 = vmul.f32 %v181, %v184
    %188 = vrot.lane.b32.xlu0 %v179, 64
    %v189 = vpop.permute.xlu0 %188
    %v191 = vmul.f32 %v181, %v189
    %193 = vrot.lane.b32.xlu0 %v191, 32
    %v194 = vpop.permute.xlu0 %193
    %v196 = vadd.f32 %v186, %v194
    %v197 = vtanh.pop %v196
    %199 = vrot.lane.b32.xlu0 %v197, 64
    %v200 = vpop.permute.xlu0 %199
    %v202 = vmul.f32 %v181, %v200
    %v203 = vpack.c.bf16 %v202, %v202
    %205 = vrot.lane.b32.xlu0 %v203, 32
    %v206 = vpop.permute.xlu0 %205
    %v208 = vsel %vm77, %v206, 0
    %210 = vmatpush.bf16.msra.mxu0 0
    %211 = vmatpush.bf16.msra.mxu0 0
    %212 = vmatpush.bf16.msra.mxu0 0
    %213 = vmatpush.bf16.msra.mxu0 0
    %214 = vmatpush.bf16.msra.mxu0 0
    %215 = vmatpush.bf16.msra.mxu0 0
    %216 = vmatpush.bf16.msra.mxu0 %v159
    %217 = vmatpush.bf16.msra.mxu0 %v158
    %218 = vmatmul.bf16.gmra.mxu0 %v208
    %v219 = vpop.f32.mrf.mxu0
    %v220 = vadd.f32 0.0, %v219
    %v221 = vpop.f32.mrf.mxu0
    %222 = vdwg.mxu0
    %v223 = vadd.f32 %v123, %v220
    %v224 = vtanh.pop %v223
    %v225 = vadd.f32 %v224, 1.0
    %v226 = vmul.f32 %v225, 0.5
    %v227 = vmul.f32 %v226, %v196
    %229 = vrot.lane.b32.xlu0 %v224, 64
    %v230 = vpop.permute.xlu0 %229
    %v232 = vmul.f32 %v226, %v230
    %234 = vrot.lane.b32.xlu0 %v232, 32
    %v235 = vpop.permute.xlu0 %234
    %v237 = vadd.f32 %v227, %v235
    %v238 = vtanh.pop %v237
    %240 = vrot.lane.b32.xlu0 %v238, 64
    %v241 = vpop.permute.xlu0 %240
    %v243 = vmul.f32 %v226, %v241
    %v244 = vpack.c.bf16 %v243, %v243
    %246 = vrot.lane.b32.xlu0 %v244, 32
    %v247 = vpop.permute.xlu0 %246
    %v249 = vsel %vm77, %v247, 0
    %251 = vmatpush.bf16.msra.mxu0 0
    %252 = vmatpush.bf16.msra.mxu0 0
    %253 = vmatpush.bf16.msra.mxu0 0
    %254 = vmatpush.bf16.msra.mxu0 0
    %255 = vmatpush.bf16.msra.mxu0 0
    %256 = vmatpush.bf16.msra.mxu0 0
    %257 = vmatpush.bf16.msra.mxu0 %v159
    %258 = vmatpush.bf16.msra.mxu0 %v158
    %259 = vmatmul.bf16.gmra.mxu0 %v249
    %v260 = vpop.f32.mrf.mxu0
    %v261 = vadd.f32 0.0, %v260
    %v262 = vpop.f32.mrf.mxu0
    %263 = vdwg.mxu0
    %v264 = vadd.f32 %v126, %v261
    %v265 = vtanh.pop %v264
    %v266 = vadd.f32 %v265, 1.0
    %v267 = vmul.f32 %v266, 0.5
    %v268 = vmul.f32 %v267, %v237
    %270 = vrot.lane.b32.xlu0 %v265, 64
    %v271 = vpop.permute.xlu0 %270
    %v273 = vmul.f32 %v267, %v271
    %275 = vrot.lane.b32.xlu0 %v273, 32
    %v276 = vpop.permute.xlu0 %275
    %v278 = vadd.f32 %v268, %v276
    %v279 = vtanh.pop %v278
    %281 = vrot.lane.b32.xlu0 %v279, 64
    %v282 = vpop.permute.xlu0 %281
    %v284 = vmul.f32 %v267, %v282
    %v285 = vpack.c.bf16 %v284, %v284
    %287 = vrot.lane.b32.xlu0 %v285, 32
    %v288 = vpop.permute.xlu0 %287
    %v290 = vsel %vm77, %v288, 0
    %292 = vmatpush.bf16.msra.mxu0 0
    %293 = vmatpush.bf16.msra.mxu0 0
    %294 = vmatpush.bf16.msra.mxu0 0
    %295 = vmatpush.bf16.msra.mxu0 0
    %296 = vmatpush.bf16.msra.mxu0 0
    %297 = vmatpush.bf16.msra.mxu0 0
    %298 = vmatpush.bf16.msra.mxu0 %v159
    %299 = vmatpush.bf16.msra.mxu0 %v158
    %300 = vmatmul.bf16.gmra.mxu0 %v290
    %v301 = vpop.f32.mrf.mxu0
    %v302 = vadd.f32 0.0, %v301
    %v303 = vpop.f32.mrf.mxu0
    %304 = vdwg.mxu0
    %v305 = vadd.f32 %v129, %v302
    %v306 = vtanh.pop %v305
    %v307 = vadd.f32 %v306, 1.0
    %v308 = vmul.f32 %v307, 0.5
    %v309 = vmul.f32 %v308, %v278
    %311 = vrot.lane.b32.xlu0 %v306, 64
    %v312 = vpop.permute.xlu0 %311
    %v314 = vmul.f32 %v308, %v312
    %316 = vrot.lane.b32.xlu0 %v314, 32
    %v317 = vpop.permute.xlu0 %316
    %v319 = vadd.f32 %v309, %v317
    %v320 = vtanh.pop %v319
    %322 = vrot.lane.b32.xlu0 %v320, 64
    %v323 = vpop.permute.xlu0 %322
    %v325 = vmul.f32 %v308, %v323
    %v326 = vpack.c.bf16 %v325, %v325
    %328 = vrot.lane.b32.xlu0 %v326, 32
    %v329 = vpop.permute.xlu0 %328
    %v331 = vsel %vm77, %v329, 0
    %333 = vmatpush.bf16.msra.mxu0 0
    %334 = vmatpush.bf16.msra.mxu0 0
    %335 = vmatpush.bf16.msra.mxu0 0
    %336 = vmatpush.bf16.msra.mxu0 0
    %337 = vmatpush.bf16.msra.mxu0 0
    %338 = vmatpush.bf16.msra.mxu0 0
    %339 = vmatpush.bf16.msra.mxu0 %v159
    %340 = vmatpush.bf16.msra.mxu0 %v158
    %341 = vmatmul.bf16.gmra.mxu0 %v331
    %v342 = vpop.f32.mrf.mxu0
    %v343 = vadd.f32 0.0, %v342
    %v344 = vpop.f32.mrf.mxu0
    %345 = vdwg.mxu0
    %v346 = vadd.f32 %v132, %v343
    %v347 = vtanh.pop %v346
    %v348 = vadd.f32 %v347, 1.0
    %v349 = vmul.f32 %v348, 0.5
    %v350 = vmul.f32 %v349, %v319
    %352 = vrot.lane.b32.xlu0 %v347, 64
    %v353 = vpop.permute.xlu0 %352
    %v355 = vmul.f32 %v349, %v353
    %357 = vrot.lane.b32.xlu0 %v355, 32
    %v358 = vpop.permute.xlu0 %357
    %v360 = vadd.f32 %v350, %v358
    %v361 = vtanh.pop %v360
    %363 = vrot.lane.b32.xlu0 %v361, 64
    %v364 = vpop.permute.xlu0 %363
    %v366 = vmul.f32 %v349, %v364
    %v367 = vpack.c.bf16 %v366, %v366
    %369 = vrot.lane.b32.xlu0 %v367, 32
    %v370 = vpop.permute.xlu0 %369
    %v372 = vsel %vm77, %v370, 0
    %374 = vmatpush.bf16.msra.mxu0 0
    %375 = vmatpush.bf16.msra.mxu0 0
    %376 = vmatpush.bf16.msra.mxu0 0
    %377 = vmatpush.bf16.msra.mxu0 0
    %378 = vmatpush.bf16.msra.mxu0 0
    %379 = vmatpush.bf16.msra.mxu0 0
    %380 = vmatpush.bf16.msra.mxu0 %v159
    %381 = vmatpush.bf16.msra.mxu0 %v158
    %382 = vmatmul.bf16.gmra.mxu0 %v372
    %v383 = vpop.f32.mrf.mxu0
    %v384 = vadd.f32 0.0, %v383
    %v385 = vpop.f32.mrf.mxu0
    %386 = vdwg.mxu0
    %v387 = vadd.f32 %v135, %v384
    %v388 = vtanh.pop %v387
    %v389 = vadd.f32 %v388, 1.0
    %v390 = vmul.f32 %v389, 0.5
    %v391 = vmul.f32 %v390, %v360
    %393 = vrot.lane.b32.xlu0 %v388, 64
    %v394 = vpop.permute.xlu0 %393
    %v396 = vmul.f32 %v390, %v394
    %398 = vrot.lane.b32.xlu0 %v396, 32
    %v399 = vpop.permute.xlu0 %398
    %v401 = vadd.f32 %v391, %v399
    %v402 = vtanh.pop %v401
    %404 = vrot.lane.b32.xlu0 %v402, 64
    %v405 = vpop.permute.xlu0 %404
    %v407 = vmul.f32 %v390, %v405
    %v408 = vpack.c.bf16 %v407, %v407
    %410 = vrot.lane.b32.xlu0 %v408, 32
    %v411 = vpop.permute.xlu0 %410
    %v413 = vsel %vm77, %v411, 0
    %415 = vmatpush.bf16.msra.mxu0 0
    %416 = vmatpush.bf16.msra.mxu0 0
    %417 = vmatpush.bf16.msra.mxu0 0
    %418 = vmatpush.bf16.msra.mxu0 0
    %419 = vmatpush.bf16.msra.mxu0 0
    %420 = vmatpush.bf16.msra.mxu0 0
    %421 = vmatpush.bf16.msra.mxu0 %v159
    %422 = vmatpush.bf16.msra.mxu0 %v158
    %423 = vmatmul.bf16.gmra.mxu0 %v413
    %v424 = vpop.f32.mrf.mxu0
    %v425 = vadd.f32 0.0, %v424
    %v426 = vpop.f32.mrf.mxu0
    %427 = vdwg.mxu0
    %v428 = vadd.f32 %v138, %v425
    %v429 = vtanh.pop %v428
    %v430 = vadd.f32 %v429, 1.0
    %v431 = vmul.f32 %v430, 0.5
    %v432 = vmul.f32 %v431, %v401
    %434 = vrot.lane.b32.xlu0 %v429, 64
    %v435 = vpop.permute.xlu0 %434
    %v437 = vmul.f32 %v431, %v435
    %439 = vrot.lane.b32.xlu0 %v437, 32
    %v440 = vpop.permute.xlu0 %439
    %v442 = vadd.f32 %v432, %v440
    %v443 = vtanh.pop %v442
    %445 = vrot.lane.b32.xlu0 %v443, 64
    %v446 = vpop.permute.xlu0 %445
    %v448 = vmul.f32 %v431, %v446
    %v449 = vpack.c.bf16 %v448, %v448
    %451 = vrot.lane.b32.xlu0 %v449, 32
    %v452 = vpop.permute.xlu0 %451
    %v454 = vsel %vm77, %v452, 0
    %456 = vmatpush.bf16.msra.mxu0 0
    %457 = vmatpush.bf16.msra.mxu0 0
    %458 = vmatpush.bf16.msra.mxu0 0
    %459 = vmatpush.bf16.msra.mxu0 0
    %460 = vmatpush.bf16.msra.mxu0 0
    %461 = vmatpush.bf16.msra.mxu0 0
    %462 = vmatpush.bf16.msra.mxu0 %v159
    %463 = vmatpush.bf16.msra.mxu0 %v158
    %464 = vmatmul.bf16.gmra.mxu0 %v454
    %v465 = vpop.f32.mrf.mxu0
    %v466 = vadd.f32 0.0, %v465
    %v467 = vpop.f32.mrf.mxu0
    %468 = vdwg.mxu0
    %v469 = vadd.f32 %v141, %v466
    %v470 = vtanh.pop %v469
    %v471 = vadd.f32 %v470, 1.0
    %v472 = vmul.f32 %v471, 0.5
    %v473 = vmul.f32 %v472, %v442
    %475 = vrot.lane.b32.xlu0 %v470, 64
    %v476 = vpop.permute.xlu0 %475
    %v478 = vmul.f32 %v472, %v476
    %480 = vrot.lane.b32.xlu0 %v478, 32
    %v481 = vpop.permute.xlu0 %480
    %v483 = vadd.f32 %v473, %v481
    %v484 = vtanh.pop %v483
    %486 = vrot.lane.b32.xlu0 %v484, 64
    %v487 = vpop.permute.xlu0 %486
    %v489 = vmul.f32 %v472, %v487
    %v490 = vld [vmem:[%s4] sm:$0xff]
    %v491 = vld [vmem:[%s4 + $0x8] sm:$0xff]
    %v492 = vld [vmem:[%s4 + $0x10] sm:$0xff]
    %v493 = vld [vmem:[%s4 + $0x18] sm:$0xff]
    %v494 = vld [vmem:[%s6] sm:$0x1]
    %v496 = vperm.slane %v494, 0
    %506 = vrot.lane.b32.xlu0 %v202, 32
    %v507 = vpop.permute.xlu0 %506
    %508 = vrot.lane.b32.xlu0 %v243, 32
    %v509 = vpop.permute.xlu0 %508
    %510 = vrot.lane.b32.xlu0 %v284, 32
    %v511 = vpop.permute.xlu0 %510
    %512 = vrot.lane.b32.xlu0 %v325, 32
    %v513 = vpop.permute.xlu0 %512
    %514 = vrot.lane.b32.xlu0 %v366, 32
    %v515 = vpop.permute.xlu0 %514
    %516 = vrot.lane.b32.xlu0 %v407, 32
    %v517 = vpop.permute.xlu0 %516
    %518 = vrot.lane.b32.xlu0 %v448, 32
    %v519 = vpop.permute.xlu0 %518
    %520 = vrot.lane.b32.xlu0 %v489, 32
    %v521 = vpop.permute.xlu0 %520
    %v522 = vsel %vm77, %v507, 0
    %v524 = vsel %vm77, %v509, 0
    %v526 = vsel %vm77, %v511, 0
    %v528 = vsel %vm77, %v513, 0
    %v530 = vsel %vm77, %v515, 0
    %v532 = vsel %vm77, %v517, 0
    %v534 = vsel %vm77, %v519, 0
    %v536 = vsel %vm77, %v521, 0
    %538 = vmatpush.msra.mxu0 0.0
    %539 = vmatpush.msra.mxu0 0.0
    %540 = vmatpush.msra.mxu0 0.0
    %541 = vmatpush.msra.mxu0 0.0
    %542 = vmatpush.msra.mxu0 0.0
    %543 = vmatpush.msra.mxu0 0.0
    %544 = vmatpush.msra.mxu0 0.0
    %545 = vmatpush.msra.mxu0 0.0
    %546 = vmatpush.msra.mxu0 0.0
    %547 = vmatpush.msra.mxu0 0.0
    %548 = vmatpush.msra.mxu0 0.0
    %549 = vmatpush.msra.mxu0 0.0
    %550 = vmatpush.msra.mxu0 %v493
    %551 = vmatpush.msra.mxu0 %v492
    %552 = vmatpush.msra.mxu0 %v491
    %553 = vmatpush.msra.mxu0 %v490
    %554 = vmatmul.f32.gmra.mxu0 %v522
    %v555 = vpop.f32.mrf.mxu0
    %v556 = vadd.f32 %v496, %v555
    %557 = vmatmul.f32.gmra.mxu0 %v524
    %v558 = vpop.f32.mrf.mxu0
    %v559 = vadd.f32 %v496, %v558
    %560 = vmatmul.f32.gmra.mxu0 %v526
    %v561 = vpop.f32.mrf.mxu0
    %v562 = vadd.f32 %v496, %v561
    %563 = vmatmul.f32.gmra.mxu0 %v528
    %v564 = vpop.f32.mrf.mxu0
    %v565 = vadd.f32 %v496, %v564
    %566 = vmatmul.f32.gmra.mxu0 %v530
    %v567 = vpop.f32.mrf.mxu0
    %v568 = vadd.f32 %v496, %v567
    %569 = vmatmul.f32.gmra.mxu0 %v532
    %v570 = vpop.f32.mrf.mxu0
    %v571 = vadd.f32 %v496, %v570
    %572 = vmatmul.f32.gmra.mxu0 %v534
    %v573 = vpop.f32.mrf.mxu0
    %v574 = vadd.f32 %v496, %v573
    %575 = vmatmul.f32.gmra.mxu0 %v536
    %v576 = vpop.f32.mrf.mxu0
    %v577 = vadd.f32 %v496, %v576
    %578 = vdwg.mxu0
    %v579 = vld [vmem:[#allocation2] sm:$0xf]
    %v580 = vld [vmem:[#allocation2 + $0x4] sm:$0xf]
    %v581 = vld [vmem:[#allocation2 + $0x8] sm:$0xf]
    %v582 = vld [vmem:[#allocation2 + $0xc] sm:$0xf]
    %v583 = vld [vmem:[%s11] sm:$0xff]
    %v584 = vld [vmem:[%s12] sm:$0xff]
    %v585 = vpack.c.bf16 %v583, %v583
    %v590 = vunpack.c.l.b16 %v579
    %v591 = vunpack.c.l.b16 %v580
    %v592 = vunpack.c.l.b16 %v581
    %v593 = vunpack.c.l.b16 %v582
    %v594 = vpack.c.b16 %v591, %v590
    %v595 = vpack.c.b16 %v593, %v592
    %v599 = vsel %vm77, %v585, 0
    %601 = vmatpush.bf16.msra.mxu0 0
    %602 = vmatpush.bf16.msra.mxu0 0
    %603 = vmatpush.bf16.msra.mxu0 0
    %604 = vmatpush.bf16.msra.mxu0 0
    %605 = vmatpush.bf16.msra.mxu0 0
    %606 = vmatpush.bf16.msra.mxu0 0
    %607 = vmatpush.bf16.msra.mxu0 %v595
    %608 = vmatpush.bf16.msra.mxu0 %v594
    %609 = vmatmul.bf16.gmra.mxu0 %v599
    %v610 = vpop.f32.mrf.mxu0
    %v611 = vadd.f32 0.0, %v610
    %v612 = vpop.f32.mrf.mxu0
    %613 = vdwg.mxu0
    %v614 = vadd.f32 %v556, %v611
    %v615 = vtanh.pop %v614
    %v616 = vadd.f32 %v615, 1.0
    %v617 = vmul.f32 %v616, 0.5
    %619 = vrot.lane.b32.xlu0 %v584, 32
    %v620 = vpop.permute.xlu0 %619
    %v622 = vmul.f32 %v617, %v620
    %624 = vrot.lane.b32.xlu0 %v615, 64
    %v625 = vpop.permute.xlu0 %624
    %v627 = vmul.f32 %v617, %v625
    %629 = vrot.lane.b32.xlu0 %v627, 32
    %v630 = vpop.permute.xlu0 %629
    %v632 = vadd.f32 %v622, %v630
    %v633 = vtanh.pop %v632
    %635 = vrot.lane.b32.xlu0 %v633, 64
    %v636 = vpop.permute.xlu0 %635
    %v638 = vmul.f32 %v617, %v636
    %v639 = vpack.c.bf16 %v638, %v638
    %641 = vrot.lane.b32.xlu0 %v639, 32
    %v642 = vpop.permute.xlu0 %641
    %v644 = vsel %vm77, %v642, 0
    %646 = vmatpush.bf16.msra.mxu0 0
    %647 = vmatpush.bf16.msra.mxu0 0
    %648 = vmatpush.bf16.msra.mxu0 0
    %649 = vmatpush.bf16.msra.mxu0 0
    %650 = vmatpush.bf16.msra.mxu0 0
    %651 = vmatpush.bf16.msra.mxu0 0
    %652 = vmatpush.bf16.msra.mxu0 %v595
    %653 = vmatpush.bf16.msra.mxu0 %v594
    %654 = vmatmul.bf16.gmra.mxu0 %v644
    %v655 = vpop.f32.mrf.mxu0
    %v656 = vadd.f32 0.0, %v655
    %v657 = vpop.f32.mrf.mxu0
    %658 = vdwg.mxu0
    %v659 = vadd.f32 %v559, %v656
    %v660 = vtanh.pop %v659
    %v661 = vadd.f32 %v660, 1.0
    %v662 = vmul.f32 %v661, 0.5
    %v663 = vmul.f32 %v662, %v632
    %665 = vrot.lane.b32.xlu0 %v660, 64
    %v666 = vpop.permute.xlu0 %665
    %v668 = vmul.f32 %v662, %v666
    %670 = vrot.lane.b32.xlu0 %v668, 32
    %v671 = vpop.permute.xlu0 %670
    %v673 = vadd.f32 %v663, %v671
    %v674 = vtanh.pop %v673
    %676 = vrot.lane.b32.xlu0 %v674, 64
    %v677 = vpop.permute.xlu0 %676
    %v679 = vmul.f32 %v662, %v677
    %v680 = vpack.c.bf16 %v679, %v679
    %682 = vrot.lane.b32.xlu0 %v680, 32
    %v683 = vpop.permute.xlu0 %682
    %v685 = vsel %vm77, %v683, 0
    %687 = vmatpush.bf16.msra.mxu0 0
    %688 = vmatpush.bf16.msra.mxu0 0
    %689 = vmatpush.bf16.msra.mxu0 0
    %690 = vmatpush.bf16.msra.mxu0 0
    %691 = vmatpush.bf16.msra.mxu0 0
    %692 = vmatpush.bf16.msra.mxu0 0
    %693 = vmatpush.bf16.msra.mxu0 %v595
    %694 = vmatpush.bf16.msra.mxu0 %v594
    %695 = vmatmul.bf16.gmra.mxu0 %v685
    %v696 = vpop.f32.mrf.mxu0
    %v697 = vadd.f32 0.0, %v696
    %v698 = vpop.f32.mrf.mxu0
    %699 = vdwg.mxu0
    %v700 = vadd.f32 %v562, %v697
    %v701 = vtanh.pop %v700
    %v702 = vadd.f32 %v701, 1.0
    %v703 = vmul.f32 %v702, 0.5
    %v704 = vmul.f32 %v703, %v673
    %706 = vrot.lane.b32.xlu0 %v701, 64
    %v707 = vpop.permute.xlu0 %706
    %v709 = vmul.f32 %v703, %v707
    %711 = vrot.lane.b32.xlu0 %v709, 32
    %v712 = vpop.permute.xlu0 %711
    %v714 = vadd.f32 %v704, %v712
    %v715 = vtanh.pop %v714
    %717 = vrot.lane.b32.xlu0 %v715, 64
    %v718 = vpop.permute.xlu0 %717
    %v720 = vmul.f32 %v703, %v718
    %v721 = vpack.c.bf16 %v720, %v720
    %723 = vrot.lane.b32.xlu0 %v721, 32
    %v724 = vpop.permute.xlu0 %723
    %v726 = vsel %vm77, %v724, 0
    %728 = vmatpush.bf16.msra.mxu0 0
    %729 = vmatpush.bf16.msra.mxu0 0
    %730 = vmatpush.bf16.msra.mxu0 0
    %731 = vmatpush.bf16.msra.mxu0 0
    %732 = vmatpush.bf16.msra.mxu0 0
    %733 = vmatpush.bf16.msra.mxu0 0
    %734 = vmatpush.bf16.msra.mxu0 %v595
    %735 = vmatpush.bf16.msra.mxu0 %v594
    %736 = vmatmul.bf16.gmra.mxu0 %v726
    %v737 = vpop.f32.mrf.mxu0
    %v738 = vadd.f32 0.0, %v737
    %v739 = vpop.f32.mrf.mxu0
    %740 = vdwg.mxu0
    %v741 = vadd.f32 %v565, %v738
    %v742 = vtanh.pop %v741
    %v743 = vadd.f32 %v742, 1.0
    %v744 = vmul.f32 %v743, 0.5
    %v745 = vmul.f32 %v744, %v714
    %747 = vrot.lane.b32.xlu0 %v742, 64
    %v748 = vpop.permute.xlu0 %747
    %v750 = vmul.f32 %v744, %v748
    %752 = vrot.lane.b32.xlu0 %v750, 32
    %v753 = vpop.permute.xlu0 %752
    %v755 = vadd.f32 %v745, %v753
    %v756 = vtanh.pop %v755
    %758 = vrot.lane.b32.xlu0 %v756, 64
    %v759 = vpop.permute.xlu0 %758
    %v761 = vmul.f32 %v744, %v759
    %v762 = vpack.c.bf16 %v761, %v761
    %764 = vrot.lane.b32.xlu0 %v762, 32
    %v765 = vpop.permute.xlu0 %764
    %v767 = vsel %vm77, %v765, 0
    %769 = vmatpush.bf16.msra.mxu0 0
    %770 = vmatpush.bf16.msra.mxu0 0
    %771 = vmatpush.bf16.msra.mxu0 0
    %772 = vmatpush.bf16.msra.mxu0 0
    %773 = vmatpush.bf16.msra.mxu0 0
    %774 = vmatpush.bf16.msra.mxu0 0
    %775 = vmatpush.bf16.msra.mxu0 %v595
    %776 = vmatpush.bf16.msra.mxu0 %v594
    %777 = vmatmul.bf16.gmra.mxu0 %v767
    %v778 = vpop.f32.mrf.mxu0
    %v779 = vadd.f32 0.0, %v778
    %v780 = vpop.f32.mrf.mxu0
    %781 = vdwg.mxu0
    %v782 = vadd.f32 %v568, %v779
    %v783 = vtanh.pop %v782
    %v784 = vadd.f32 %v783, 1.0
    %v785 = vmul.f32 %v784, 0.5
    %v786 = vmul.f32 %v785, %v755
    %788 = vrot.lane.b32.xlu0 %v783, 64
    %v789 = vpop.permute.xlu0 %788
    %v791 = vmul.f32 %v785, %v789
    %793 = vrot.lane.b32.xlu0 %v791, 32
    %v794 = vpop.permute.xlu0 %793
    %v796 = vadd.f32 %v786, %v794
    %v797 = vtanh.pop %v796
    %799 = vrot.lane.b32.xlu0 %v797, 64
    %v800 = vpop.permute.xlu0 %799
    %v802 = vmul.f32 %v785, %v800
    %v803 = vpack.c.bf16 %v802, %v802
    %805 = vrot.lane.b32.xlu0 %v803, 32
    %v806 = vpop.permute.xlu0 %805
    %v808 = vsel %vm77, %v806, 0
    %810 = vmatpush.bf16.msra.mxu0 0
    %811 = vmatpush.bf16.msra.mxu0 0
    %812 = vmatpush.bf16.msra.mxu0 0
    %813 = vmatpush.bf16.msra.mxu0 0
    %814 = vmatpush.bf16.msra.mxu0 0
    %815 = vmatpush.bf16.msra.mxu0 0
    %816 = vmatpush.bf16.msra.mxu0 %v595
    %817 = vmatpush.bf16.msra.mxu0 %v594
    %818 = vmatmul.bf16.gmra.mxu0 %v808
    %v819 = vpop.f32.mrf.mxu0
    %v820 = vadd.f32 0.0, %v819
    %v821 = vpop.f32.mrf.mxu0
    %822 = vdwg.mxu0
    %v823 = vadd.f32 %v571, %v820
    %v824 = vtanh.pop %v823
    %v825 = vadd.f32 %v824, 1.0
    %v826 = vmul.f32 %v825, 0.5
    %v827 = vmul.f32 %v826, %v796
    %829 = vrot.lane.b32.xlu0 %v824, 64
    %v830 = vpop.permute.xlu0 %829
    %v832 = vmul.f32 %v826, %v830
    %834 = vrot.lane.b32.xlu0 %v832, 32
    %v835 = vpop.permute.xlu0 %834
    %v837 = vadd.f32 %v827, %v835
    %v838 = vtanh.pop %v837
    %840 = vrot.lane.b32.xlu0 %v838, 64
    %v841 = vpop.permute.xlu0 %840
    %v843 = vmul.f32 %v826, %v841
    %v844 = vpack.c.bf16 %v843, %v843
    %846 = vrot.lane.b32.xlu0 %v844, 32
    %v847 = vpop.permute.xlu0 %846
    %v849 = vsel %vm77, %v847, 0
    %851 = vmatpush.bf16.msra.mxu0 0
    %852 = vmatpush.bf16.msra.mxu0 0
    %853 = vmatpush.bf16.msra.mxu0 0
    %854 = vmatpush.bf16.msra.mxu0 0
    %855 = vmatpush.bf16.msra.mxu0 0
    %856 = vmatpush.bf16.msra.mxu0 0
    %857 = vmatpush.bf16.msra.mxu0 %v595
    %858 = vmatpush.bf16.msra.mxu0 %v594
    %859 = vmatmul.bf16.gmra.mxu0 %v849
    %v860 = vpop.f32.mrf.mxu0
    %v861 = vadd.f32 0.0, %v860
    %v862 = vpop.f32.mrf.mxu0
    %863 = vdwg.mxu0
    %v864 = vadd.f32 %v574, %v861
    %v865 = vtanh.pop %v864
    %v866 = vadd.f32 %v865, 1.0
    %v867 = vmul.f32 %v866, 0.5
    %v868 = vmul.f32 %v867, %v837
    %870 = vrot.lane.b32.xlu0 %v865, 64
    %v871 = vpop.permute.xlu0 %870
    %v873 = vmul.f32 %v867, %v871
    %875 = vrot.lane.b32.xlu0 %v873, 32
    %v876 = vpop.permute.xlu0 %875
    %v878 = vadd.f32 %v868, %v876
    %v879 = vtanh.pop %v878
    %881 = vrot.lane.b32.xlu0 %v879, 64
    %v882 = vpop.permute.xlu0 %881
    %v884 = vmul.f32 %v867, %v882
    %v885 = vpack.c.bf16 %v884, %v884
    %887 = vrot.lane.b32.xlu0 %v885, 32
    %v888 = vpop.permute.xlu0 %887
    %v890 = vsel %vm77, %v888, 0
    %892 = vmatpush.bf16.msra.mxu0 0
    %893 = vmatpush.bf16.msra.mxu0 0
    %894 = vmatpush.bf16.msra.mxu0 0
    %895 = vmatpush.bf16.msra.mxu0 0
    %896 = vmatpush.bf16.msra.mxu0 0
    %897 = vmatpush.bf16.msra.mxu0 0
    %898 = vmatpush.bf16.msra.mxu0 %v595
    %899 = vmatpush.bf16.msra.mxu0 %v594
    %900 = vmatmul.bf16.gmra.mxu0 %v890
    %v901 = vpop.f32.mrf.mxu0
    %v902 = vadd.f32 0.0, %v901
    %v903 = vpop.f32.mrf.mxu0
    %904 = vdwg.mxu0
    %v905 = vadd.f32 %v577, %v902
    %v906 = vtanh.pop %v905
    %v907 = vadd.f32 %v906, 1.0
    %v908 = vmul.f32 %v907, 0.5
    %v909 = vmul.f32 %v908, %v878
    %911 = vrot.lane.b32.xlu0 %v906, 64
    %v912 = vpop.permute.xlu0 %911
    %v914 = vmul.f32 %v908, %v912
    %916 = vrot.lane.b32.xlu0 %v914, 32
    %v917 = vpop.permute.xlu0 %916
    %v919 = vadd.f32 %v909, %v917
    %v920 = vtanh.pop %v919
    %922 = vrot.lane.b32.xlu0 %v920, 64
    %v923 = vpop.permute.xlu0 %922
    %v925 = vmul.f32 %v908, %v923
    %v926 = vld [vmem:[%s7] sm:$0xff]
    %v927 = vld [vmem:[%s7 + $0x8] sm:$0xff]
    %v928 = vld [vmem:[%s7 + $0x10] sm:$0xff]
    %v929 = vld [vmem:[%s7 + $0x18] sm:$0xff]
    %v930 = vld [vmem:[%s8] sm:$0x1]
    %v932 = vperm.slane %v930, 0
    %942 = vrot.lane.b32.xlu0 %v638, 32
    %v943 = vpop.permute.xlu0 %942
    %944 = vrot.lane.b32.xlu0 %v679, 32
    %v945 = vpop.permute.xlu0 %944
    %946 = vrot.lane.b32.xlu0 %v720, 32
    %v947 = vpop.permute.xlu0 %946
    %948 = vrot.lane.b32.xlu0 %v761, 32
    %v949 = vpop.permute.xlu0 %948
    %950 = vrot.lane.b32.xlu0 %v802, 32
    %v951 = vpop.permute.xlu0 %950
    %952 = vrot.lane.b32.xlu0 %v843, 32
    %v953 = vpop.permute.xlu0 %952
    %954 = vrot.lane.b32.xlu0 %v884, 32
    %v955 = vpop.permute.xlu0 %954
    %956 = vrot.lane.b32.xlu0 %v925, 32
    %v957 = vpop.permute.xlu0 %956
    %v958 = vsel %vm77, %v943, 0
    %v960 = vsel %vm77, %v945, 0
    %v962 = vsel %vm77, %v947, 0
    %v964 = vsel %vm77, %v949, 0
    %v966 = vsel %vm77, %v951, 0
    %v968 = vsel %vm77, %v953, 0
    %v970 = vsel %vm77, %v955, 0
    %v972 = vsel %vm77, %v957, 0
    %974 = vmatpush.msra.mxu0 0.0
    %975 = vmatpush.msra.mxu0 0.0
    %976 = vmatpush.msra.mxu0 0.0
    %977 = vmatpush.msra.mxu0 0.0
    %978 = vmatpush.msra.mxu0 0.0
    %979 = vmatpush.msra.mxu0 0.0
    %980 = vmatpush.msra.mxu0 0.0
    %981 = vmatpush.msra.mxu0 0.0
    %982 = vmatpush.msra.mxu0 0.0
    %983 = vmatpush.msra.mxu0 0.0
    %984 = vmatpush.msra.mxu0 0.0
    %985 = vmatpush.msra.mxu0 0.0
    %986 = vmatpush.msra.mxu0 %v929
    %987 = vmatpush.msra.mxu0 %v928
    %988 = vmatpush.msra.mxu0 %v927
    %989 = vmatpush.msra.mxu0 %v926
    %990 = vmatmul.f32.gmra.mxu0 %v958
    %v991 = vpop.f32.mrf.mxu0
    %v992 = vadd.f32 %v932, %v991
    %993 = vmatmul.f32.gmra.mxu0 %v960
    %v994 = vpop.f32.mrf.mxu0
    %v995 = vadd.f32 %v932, %v994
    %996 = vmatmul.f32.gmra.mxu0 %v962
    %v997 = vpop.f32.mrf.mxu0
    %v998 = vadd.f32 %v932, %v997
    %999 = vmatmul.f32.gmra.mxu0 %v964
    %v1000 = vpop.f32.mrf.mxu0
    %v1001 = vadd.f32 %v932, %v1000
    %1002 = vmatmul.f32.gmra.mxu0 %v966
    %v1003 = vpop.f32.mrf.mxu0
    %v1004 = vadd.f32 %v932, %v1003
    %1005 = vmatmul.f32.gmra.mxu0 %v968
    %v1006 = vpop.f32.mrf.mxu0
    %v1007 = vadd.f32 %v932, %v1006
    %1008 = vmatmul.f32.gmra.mxu0 %v970
    %v1009 = vpop.f32.mrf.mxu0
    %v1010 = vadd.f32 %v932, %v1009
    %1011 = vmatmul.f32.gmra.mxu0 %v972
    %v1012 = vpop.f32.mrf.mxu0
    %v1013 = vadd.f32 %v932, %v1012
    %1014 = vdwg.mxu0
    %v1015 = vmax.f32 %v992, 0.0
    %v1016 = vmax.f32 %v995, 0.0
    %v1017 = vmax.f32 %v998, 0.0
    %v1018 = vmax.f32 %v1001, 0.0
    %v1019 = vmax.f32 %v1004, 0.0
    %v1020 = vmax.f32 %v1007, 0.0
    %v1021 = vmax.f32 %v1010, 0.0
    %v1022 = vmax.f32 %v1013, 0.0
    %1023 = vst [vmem:[%s13] sm:$0xff] %v1015
    %1024 = vst [vmem:[%s13 + $0x8] sm:$0xff] %v1016
    %1025 = vst [vmem:[%s13 + $0x10] sm:$0xff] %v1017
    %1026 = vst [vmem:[%s13 + $0x18] sm:$0xff] %v1018
    %1027 = vst [vmem:[%s13 + $0x20] sm:$0xff] %v1019
    %1028 = vst [vmem:[%s13 + $0x28] sm:$0xff] %v1020
    %1029 = vst [vmem:[%s13 + $0x30] sm:$0xff] %v1021
    %1030 = vst [vmem:[%s13 + $0x38] sm:$0xff] %v1022
    // Predicated region
    $region58: #{eeg_lstm_forward.1} parent=1 // pred_check
      _
    $region59: #{eeg_lstm_forward.1} parent=1 // pred_check_branch
      %1032 = sbr.rel (0) target = $region61
    $region60: #{eeg_lstm_forward.1} parent=1 // pred_region
      _
    $region61: #{eeg_lstm_forward.1} parent=1 // pred_fallthru
      _
    // Predicated region
    $region62: #{eeg_lstm_forward.1} parent=1 // pred_check
      _
    $region63: #{eeg_lstm_forward.1} parent=1 // pred_check_branch
      %1034 = sbr.rel (0) target = $region65
    $region64: #{eeg_lstm_forward.1} parent=1 // pred_region
      _
    $region65: #{eeg_lstm_forward.1} parent=1 // pred_fallthru
      _
    %1035 = vsyncpa [#allocation3], 1

</llo_original>
